<compile_context>
chip_gen: v6e
topology: v6e:2x2x1
jax: 0.10.0
libtpu: 0.0.40
codegen_flags: <defaults>
</compile_context>

<pallas_src>
import functools
import math

import jax
import jax.numpy as jnp
from jax.experimental import pallas as pl
from jax.experimental.pallas import tpu as pltpu

EPS = 1e-5


def dncnn_kernel(x_ref, w0_ref, wres_ref, gamma_ref, beta_ref, wlast_ref, o_ref,
                 *, seq_len):
    # x_ref:     (1, N*L)          input, batch folded into lanes
    # w0_ref:    (F, 3)            first conv weights (K=3 taps)
    # wres_ref:  (2*NB, F, 3F)     tap-fused residual conv weights
    # gamma_ref: (2*NB, F, 1)      BN scale
    # beta_ref:  (2*NB, F, 1)      BN bias
    # wlast_ref: (8, 3F)           tap-fused last conv (row 0 real, rows 1..7 zero)
    # o_ref:     (8, N*L)          row 0 is the network output
    NL = x_ref.shape[1]
    NB = wres_ref.shape[0] // 2
    L = seq_len

    # 0/1 lane masks that zero conv taps crossing a sample boundary
    # (lane p holds sample n = p // L, position l = p % L).
    pos = jax.lax.broadcasted_iota(jnp.int32, (1, NL), 1) % L
    mask_lo = (pos != 0).astype(jnp.float32)        # kills x[l-1] at l == 0
    mask_hi = (pos != L - 1).astype(jnp.float32)    # kills x[l+1] at l == L-1

    def shift_stack(a):
        # a: (C, NL) -> (3C, NL) = [a[l-1]; a[l]; a[l+1]] with zero "same" padding.
        left = pltpu.roll(a, 1, axis=1) * mask_lo       # a[l-1]
        right = pltpu.roll(a, NL - 1, axis=1) * mask_hi  # a[l+1]
        return jnp.concatenate([left, a, right], axis=0)

    inv_cnt = 1.0 / NL

    def batchnorm(y, g, b):
        # Training-mode BatchNorm1d: per-channel batch stats over (N, L), biased var.
        mean = jnp.sum(y, axis=1, keepdims=True) * inv_cnt         # (F, 1)
        ex2 = jnp.sum(y * y, axis=1, keepdims=True) * inv_cnt      # (F, 1)
        scale = jax.lax.rsqrt(ex2 - mean * mean + EPS) * g         # (F, 1)
        return (y - mean) * scale + b

    # ---------- first conv (1 -> F, K=3) + ReLU: tiny contraction, do it on the VPU ----------
    x = x_ref[...]                                                  # (1, NL)
    x_l = pltpu.roll(x, 1, axis=1) * mask_lo
    x_r = pltpu.roll(x, NL - 1, axis=1) * mask_hi
    h = (w0_ref[:, 0:1] * x_l + w0_ref[:, 1:2] * x + w0_ref[:, 2:3] * x_r)
    h = jnp.maximum(h, 0.0)                                         # (F, NL)

    # ---------- residual blocks (fori_loop, dynamic weight indexing) ----------
    def res_block(blk, h):
        i0 = 2 * blk
        y = jnp.dot(wres_ref[i0], shift_stack(h),
                    preferred_element_type=jnp.float32)             # (F, NL)
        y = jnp.maximum(batchnorm(y, gamma_ref[i0], beta_ref[i0]), 0.0)
        y = jnp.dot(wres_ref[i0 + 1], shift_stack(y),
                    preferred_element_type=jnp.float32)             # (F, NL)
        y = batchnorm(y, gamma_ref[i0 + 1], beta_ref[i0 + 1])
        return jnp.maximum(h + y, 0.0)

    h = jax.lax.fori_loop(0, NB, res_block, h)

    # ---------- last conv (F -> 1) as a single MXU matmul, full-tile store ----------
    o_ref[...] = jnp.dot(wlast_ref[...], shift_stack(h),
                         preferred_element_type=jnp.float32)        # (8, NL)


@jax.jit
def dncnn_forward(x, w0_k, wres_k, gamma_k, beta_k, wlast_k):
    N, C, L = x.shape
    NL = N * L
    n_conv, F, KF = wres_k.shape
    flops = (2 * n_conv * F * KF * NL          # residual convs on the MXU
             + 8 * F * NL                      # first conv (VPU) + BN/ReLU-ish
             + 2 * wlast_k.shape[0] * KF * NL)  # last conv
    bytes_accessed = 4 * (x.size + w0_k.size + wres_k.size + gamma_k.size
                          + beta_k.size + wlast_k.size + 8 * NL)
    out8 = pl.pallas_call(
        functools.partial(dncnn_kernel, seq_len=L),
        out_shape=jax.ShapeDtypeStruct((8, NL), jnp.float32),
        in_specs=[pl.BlockSpec(memory_space=pltpu.MemorySpace.VMEM)] * 6,
        out_specs=pl.BlockSpec(memory_space=pltpu.MemorySpace.VMEM),
        compiler_params=pltpu.CompilerParams(vmem_limit_bytes=32 * 1024 * 1024),
        cost_estimate=pl.CostEstimate(flops=int(flops),
                                      transcendentals=int(n_conv * F),
                                      bytes_accessed=int(bytes_accessed)),
    )(x.reshape(1, NL), w0_k, wres_k, gamma_k, beta_k, wlast_k)
    return out8[0].reshape(N, L)[:, None, :]


# ---------------- deterministic parameter initialization (mirrors init_weights) ----------------
def kaiming_conv(key, co, ci, k):
    # kaiming_normal_, a=0, mode='fan_in'  ->  std = sqrt(2 / (ci * k))
    std = math.sqrt(2.0 / (ci * k))
    return std * jax.random.normal(key, (co, ci, k), jnp.float32)


def bn_gamma(key, f):
    std = math.sqrt(2.0 / 9.0 / 64.0)
    return jnp.clip(std * jax.random.normal(key, (f,), jnp.float32), -0.025, 0.025)


def fuse_conv_weight(w):
    # torch layout (co, ci, k) -> (co, k*ci), tap-major, matching shift_stack order
    # (rows [0:F] = tap t=0 -> x[l-1], [F:2F] = t=1 -> x[l], [2F:3F] = t=2 -> x[l+1]).
    co, ci, k = w.shape
    return jnp.transpose(w, (0, 2, 1)).reshape(co, k * ci)


# ---------------- pure-JAX reference (same math, torch weight layout) ----------------
def conv1d_ref(x, w):
    return jax.lax.conv_general_dilated(
        x, w, window_strides=(1,), padding=((1, 1),),
        dimension_numbers=("NCH", "OIH", "NCH"),
        precision=jax.lax.Precision.HIGHEST)


def bn_ref(y, g, b):
    mean = jnp.mean(y, axis=(0, 2), keepdims=True)
    var = jnp.mean(jnp.square(y - mean), axis=(0, 2), keepdims=True)
    return (y - mean) * jax.lax.rsqrt(var + EPS) * g[None, :, None] + b[None, :, None]


def forward_ref(x, w0, res, wlast):
    h = jax.nn.relu(conv1d_ref(x, w0))
    for (w1, g1, b1), (w2, g2, b2) in res:
        idn = h
        y = jax.nn.relu(bn_ref(conv1d_ref(h, w1), g1, b1))
        y = bn_ref(conv1d_ref(y, w2), g2, b2)
        h = jax.nn.relu(idn + y)
    return conv1d_ref(h, wlast)


if __name__ == "__main__":
    N, C, L = 2, 1, 128
    NUM_LAYERS, K, F = 17, 3, 64
    NB = (NUM_LAYERS - 2) // 2      # 7 residual blocks

    root = jax.random.PRNGKey(0)
    k_x, k_p = jax.random.split(root)
    x = jax.random.normal(k_x, (N, C, L), jnp.float32)

    keys = iter(jax.random.split(k_p, 2 + 4 * NB))
    w0 = kaiming_conv(next(keys), F, C, K)                   # (F, 1, K)
    res = []
    for _ in range(NB):
        w1 = kaiming_conv(next(keys), F, F, K)
        g1 = bn_gamma(next(keys), F)
        b1 = jnp.zeros((F,), jnp.float32)
        w2 = kaiming_conv(next(keys), F, F, K)
        g2 = bn_gamma(next(keys), F)
        b2 = jnp.zeros((F,), jnp.float32)
        res.append(((w1, g1, b1), (w2, g2, b2)))
    wlast = kaiming_conv(next(keys), C, F, K)                # (1, F, K)

    # Repack into kernel-friendly, tap-fused, lane-dense layouts.
    w0_k = w0[:, 0, :]                                                           # (F, K)
    wres_k = jnp.stack([fuse_conv_weight(w) for blk in res for (w, _, _) in blk])  # (2*NB, F, 3F)
    gamma_k = jnp.stack([g for blk in res for (_, g, _) in blk])[..., None]      # (2*NB, F, 1)
    beta_k = jnp.stack([b for blk in res for (_, _, b) in blk])[..., None]       # (2*NB, F, 1)
    wlast_k = jnp.zeros((8, K * F), jnp.float32).at[0].set(fuse_conv_weight(wlast)[0])  # (8, 3F)

    out = jax.block_until_ready(
        dncnn_forward(x, w0_k, wres_k, gamma_k, beta_k, wlast_k))

    ref = forward_ref(x, w0, res, wlast)
    err = float(jnp.max(jnp.abs(out - ref)))
    assert out.shape == (N, C, L), out.shape
    assert err < 5e-3, f"max abs err vs reference = {err}"
    print("KERNEL_OK")
</pallas_src>

<mosaic_0001>
module attributes {stable_mosaic.version = 11 : i64} {
  func.func @dncnn_kernel(%arg0: memref<1x256xf32, #tpu.memory_space<vmem>>, %arg1: memref<64x3xf32, #tpu.memory_space<vmem>>, %arg2: memref<14x64x192xf32, #tpu.memory_space<vmem>>, %arg3: memref<14x64x1xf32, #tpu.memory_space<vmem>>, %arg4: memref<14x64x1xf32, #tpu.memory_space<vmem>>, %arg5: memref<8x192xf32, #tpu.memory_space<vmem>>, %arg6: memref<8x256xf32, #tpu.memory_space<vmem>>) attributes {dimension_semantics = [], scalar_prefetch = 0 : i64, scratch_operands = 0 : i64, tpu.core_type = #tpu.core_type<tc>} {
    %0 = tpu.iota {dimensions = array<i32: 1>} : vector<1x256xi32>
    %c128_i32 = arith.constant 128 : i32
    %c0_i32 = arith.constant 0 : i32
    %1 = arith.cmpi eq, %c128_i32, %c0_i32 : i32
    %c1_i32 = arith.constant 1 : i32
    %2 = arith.select %1, %c1_i32, %c128_i32 : i32
    %3 = vector.broadcast %2 : i32 to vector<1x256xi32>
    %4 = arith.remsi %0, %3 : vector<1x256xi32>
    %c0_i32_0 = arith.constant 0 : i32
    %5 = vector.broadcast %c0_i32_0 : i32 to vector<1x256xi32>
    %6 = arith.cmpi ne, %4, %5 : vector<1x256xi32>
    %c0_i32_1 = arith.constant 0 : i32
    %7 = vector.broadcast %c0_i32_1 : i32 to vector<1x256xi32>
    %8 = arith.cmpi slt, %4, %7 : vector<1x256xi32>
    %c0_i32_2 = arith.constant 0 : i32
    %9 = arith.cmpi slt, %2, %c0_i32_2 : i32
    %10 = vector.broadcast %9 : i1 to vector<1x256xi1>
    %11 = vector.broadcast %10 : vector<1x256xi1> to vector<1x256xi1>
    %12 = arith.xori %8, %11 : vector<1x256xi1>
    %13 = arith.andi %12, %6 : vector<1x256xi1>
    %14 = vector.broadcast %2 : i32 to vector<1x256xi32>
    %15 = arith.addi %4, %14 : vector<1x256xi32>
    %16 = arith.select %13, %15, %4 : vector<1x256xi1>, vector<1x256xi32>
    %c0_i32_3 = arith.constant 0 : i32
    %17 = vector.broadcast %c0_i32_3 : i32 to vector<1x256xi32>
    %18 = arith.cmpi ne, %16, %17 : vector<1x256xi32>
    %19 = arith.extui %18 : vector<1x256xi1> to vector<1x256xi32>
    %20 = arith.sitofp %19 : vector<1x256xi32> to vector<1x256xf32>
    %c127_i32 = arith.constant 127 : i32
    %21 = vector.broadcast %c127_i32 : i32 to vector<1x256xi32>
    %22 = arith.cmpi ne, %16, %21 : vector<1x256xi32>
    %23 = arith.extui %22 : vector<1x256xi1> to vector<1x256xi32>
    %24 = arith.sitofp %23 : vector<1x256xi32> to vector<1x256xf32>
    %c0 = arith.constant 0 : index
    %c0_4 = arith.constant 0 : index
    %25 = vector.load %arg0[%c0, %c0_4] : memref<1x256xf32, #tpu.memory_space<vmem>>, vector<1x256xf32>
    %c1_i32_5 = arith.constant 1 : i32
    %26 = tpu.dynamic_rotate %25 by %c1_i32_5 dim 1 : vector<1x256xf32>, i32 -> vector<1x256xf32>
    %27 = arith.mulf %26, %20 : vector<1x256xf32>
    %c255_i32 = arith.constant 255 : i32
    %28 = tpu.dynamic_rotate %25 by %c255_i32 dim 1 : vector<1x256xf32>, i32 -> vector<1x256xf32>
    %29 = arith.mulf %28, %24 : vector<1x256xf32>
    %c0_6 = arith.constant 0 : index
    %c0_7 = arith.constant 0 : index
    %30 = vector.load %arg1[%c0_6, %c0_7] : memref<64x3xf32, #tpu.memory_space<vmem>>, vector<64x1xf32>
    %31 = vector.broadcast %30 : vector<64x1xf32> to vector<64x256xf32>
    %32 = vector.broadcast %27 : vector<1x256xf32> to vector<64x256xf32>
    %33 = arith.mulf %31, %32 : vector<64x256xf32>
    %c0_8 = arith.constant 0 : index
    %c1 = arith.constant 1 : index
    %34 = vector.load %arg1[%c0_8, %c1] : memref<64x3xf32, #tpu.memory_space<vmem>>, vector<64x1xf32>
    %35 = vector.broadcast %34 : vector<64x1xf32> to vector<64x256xf32>
    %36 = vector.broadcast %25 : vector<1x256xf32> to vector<64x256xf32>
    %37 = arith.mulf %35, %36 : vector<64x256xf32>
    %38 = arith.addf %33, %37 : vector<64x256xf32>
    %c0_9 = arith.constant 0 : index
    %c2 = arith.constant 2 : index
    %39 = vector.load %arg1[%c0_9, %c2] : memref<64x3xf32, #tpu.memory_space<vmem>>, vector<64x1xf32>
    %40 = vector.broadcast %39 : vector<64x1xf32> to vector<64x256xf32>
    %41 = vector.broadcast %29 : vector<1x256xf32> to vector<64x256xf32>
    %42 = arith.mulf %40, %41 : vector<64x256xf32>
    %43 = arith.addf %38, %42 : vector<64x256xf32>
    %cst = arith.constant 0.000000e+00 : f32
    %44 = vector.broadcast %cst : f32 to vector<64x256xf32>
    %45 = arith.maximumf %43, %44 : vector<64x256xf32>
    %c0_i32_10 = arith.constant 0 : i32
    %c7_i32 = arith.constant 7 : i32
    %46 = arith.addi %c0_i32_10, %c7_i32 : i32
    %c1_i32_11 = arith.constant 1 : i32
    %47 = scf.for %arg7 = %c0_i32_10 to %46 step %c1_i32_11 iter_args(%arg8 = %45) -> (vector<64x256xf32>)  : i32 {
      %c2_i32 = arith.constant 2 : i32
      %58 = arith.muli %c2_i32, %arg7 : i32
      %59 = arith.index_cast %58 : i32 to index
      %c0_20 = arith.constant 0 : index
      %c0_21 = arith.constant 0 : index
      %60 = vector.load %arg2[%59, %c0_20, %c0_21] : memref<14x64x192xf32, #tpu.memory_space<vmem>>, vector<1x64x192xf32>
      %61 = vector.shape_cast %60 : vector<1x64x192xf32> to vector<64x192xf32>
      %c1_i32_22 = arith.constant 1 : i32
      %62 = tpu.dynamic_rotate %arg8 by %c1_i32_22 dim 1 : vector<64x256xf32>, i32 -> vector<64x256xf32>
      %63 = vector.broadcast %20 : vector<1x256xf32> to vector<64x256xf32>
      %64 = arith.mulf %62, %63 : vector<64x256xf32>
      %c255_i32_23 = arith.constant 255 : i32
      %65 = tpu.dynamic_rotate %arg8 by %c255_i32_23 dim 1 : vector<64x256xf32>, i32 -> vector<64x256xf32>
      %66 = vector.broadcast %24 : vector<1x256xf32> to vector<64x256xf32>
      %67 = arith.mulf %65, %66 : vector<64x256xf32>
      %68 = tpu.concatenate %64, %arg8, %67 in 0 : vector<64x256xf32>, vector<64x256xf32>, vector<64x256xf32> -> vector<192x256xf32>
      %cst_24 = arith.constant dense<0.000000e+00> : vector<64x256xf32>
      %69 = tpu.matmul %61, %68, %cst_24 {dimension_numbers = #tpu.dot_dimension_numbers<[1], [0], [0], [1], [0, 0, 1, 1], [], []>} : vector<64x192xf32>, vector<192x256xf32>, vector<64x256xf32> -> vector<64x256xf32>
      %70 = arith.index_cast %58 : i32 to index
      %c0_25 = arith.constant 0 : index
      %c0_26 = arith.constant 0 : index
      %71 = vector.load %arg3[%70, %c0_25, %c0_26] : memref<14x64x1xf32, #tpu.memory_space<vmem>>, vector<1x64x1xf32>
      %72 = vector.shape_cast %71 : vector<1x64x1xf32> to vector<64x1xf32>
      %73 = arith.index_cast %58 : i32 to index
      %c0_27 = arith.constant 0 : index
      %c0_28 = arith.constant 0 : index
      %74 = vector.load %arg4[%73, %c0_27, %c0_28] : memref<14x64x1xf32, #tpu.memory_space<vmem>>, vector<1x64x1xf32>
      %75 = vector.shape_cast %74 : vector<1x64x1xf32> to vector<64x1xf32>
      %cst_29 = arith.constant dense<0.000000e+00> : vector<64xf32>
      %76 = vector.multi_reduction <add>, %69, %cst_29 [1] : vector<64x256xf32> to vector<64xf32>
      %77 = vector.shape_cast %76 : vector<64xf32> to vector<64x1xf32>
      %cst_30 = arith.constant 3.906250e-03 : f32
      %78 = vector.broadcast %cst_30 : f32 to vector<64x1xf32>
      %79 = arith.mulf %77, %78 : vector<64x1xf32>
      %80 = arith.mulf %69, %69 : vector<64x256xf32>
      %cst_31 = arith.constant dense<0.000000e+00> : vector<64xf32>
      %81 = vector.multi_reduction <add>, %80, %cst_31 [1] : vector<64x256xf32> to vector<64xf32>
      %82 = vector.shape_cast %81 : vector<64xf32> to vector<64x1xf32>
      %cst_32 = arith.constant 3.906250e-03 : f32
      %83 = vector.broadcast %cst_32 : f32 to vector<64x1xf32>
      %84 = arith.mulf %82, %83 : vector<64x1xf32>
      %85 = arith.mulf %79, %79 : vector<64x1xf32>
      %86 = arith.subf %84, %85 : vector<64x1xf32>
      %cst_33 = arith.constant 9.99999974E-6 : f32
      %87 = vector.broadcast %cst_33 : f32 to vector<64x1xf32>
      %88 = arith.addf %86, %87 : vector<64x1xf32>
      %89 = math.rsqrt %88 : vector<64x1xf32>
      %90 = arith.mulf %89, %72 : vector<64x1xf32>
      %91 = vector.broadcast %79 : vector<64x1xf32> to vector<64x256xf32>
      %92 = arith.subf %69, %91 : vector<64x256xf32>
      %93 = vector.broadcast %90 : vector<64x1xf32> to vector<64x256xf32>
      %94 = arith.mulf %92, %93 : vector<64x256xf32>
      %95 = vector.broadcast %75 : vector<64x1xf32> to vector<64x256xf32>
      %96 = arith.addf %94, %95 : vector<64x256xf32>
      %cst_34 = arith.constant 0.000000e+00 : f32
      %97 = vector.broadcast %cst_34 : f32 to vector<64x256xf32>
      %98 = arith.maximumf %96, %97 : vector<64x256xf32>
      %c1_i32_35 = arith.constant 1 : i32
      %99 = arith.addi %58, %c1_i32_35 : i32
      %100 = arith.index_cast %99 : i32 to index
      %c0_36 = arith.constant 0 : index
      %c0_37 = arith.constant 0 : index
      %101 = vector.load %arg2[%100, %c0_36, %c0_37] : memref<14x64x192xf32, #tpu.memory_space<vmem>>, vector<1x64x192xf32>
      %102 = vector.shape_cast %101 : vector<1x64x192xf32> to vector<64x192xf32>
      %c1_i32_38 = arith.constant 1 : i32
      %103 = tpu.dynamic_rotate %98 by %c1_i32_38 dim 1 : vector<64x256xf32>, i32 -> vector<64x256xf32>
      %104 = vector.broadcast %20 : vector<1x256xf32> to vector<64x256xf32>
      %105 = arith.mulf %103, %104 : vector<64x256xf32>
      %c255_i32_39 = arith.constant 255 : i32
      %106 = tpu.dynamic_rotate %98 by %c255_i32_39 dim 1 : vector<64x256xf32>, i32 -> vector<64x256xf32>
      %107 = vector.broadcast %24 : vector<1x256xf32> to vector<64x256xf32>
      %108 = arith.mulf %106, %107 : vector<64x256xf32>
      %109 = tpu.concatenate %105, %98, %108 in 0 : vector<64x256xf32>, vector<64x256xf32>, vector<64x256xf32> -> vector<192x256xf32>
      %cst_40 = arith.constant dense<0.000000e+00> : vector<64x256xf32>
      %110 = tpu.matmul %102, %109, %cst_40 {dimension_numbers = #tpu.dot_dimension_numbers<[1], [0], [0], [1], [0, 0, 1, 1], [], []>} : vector<64x192xf32>, vector<192x256xf32>, vector<64x256xf32> -> vector<64x256xf32>
      %c1_i32_41 = arith.constant 1 : i32
      %111 = arith.addi %58, %c1_i32_41 : i32
      %112 = arith.index_cast %111 : i32 to index
      %c0_42 = arith.constant 0 : index
      %c0_43 = arith.constant 0 : index
      %113 = vector.load %arg3[%112, %c0_42, %c0_43] : memref<14x64x1xf32, #tpu.memory_space<vmem>>, vector<1x64x1xf32>
      %114 = vector.shape_cast %113 : vector<1x64x1xf32> to vector<64x1xf32>
      %c1_i32_44 = arith.constant 1 : i32
      %115 = arith.addi %58, %c1_i32_44 : i32
      %116 = arith.index_cast %115 : i32 to index
      %c0_45 = arith.constant 0 : index
      %c0_46 = arith.constant 0 : index
      %117 = vector.load %arg4[%116, %c0_45, %c0_46] : memref<14x64x1xf32, #tpu.memory_space<vmem>>, vector<1x64x1xf32>
      %118 = vector.shape_cast %117 : vector<1x64x1xf32> to vector<64x1xf32>
      %cst_47 = arith.constant dense<0.000000e+00> : vector<64xf32>
      %119 = vector.multi_reduction <add>, %110, %cst_47 [1] : vector<64x256xf32> to vector<64xf32>
      %120 = vector.shape_cast %119 : vector<64xf32> to vector<64x1xf32>
      %cst_48 = arith.constant 3.906250e-03 : f32
      %121 = vector.broadcast %cst_48 : f32 to vector<64x1xf32>
      %122 = arith.mulf %120, %121 : vector<64x1xf32>
      %123 = arith.mulf %110, %110 : vector<64x256xf32>
      %cst_49 = arith.constant dense<0.000000e+00> : vector<64xf32>
      %124 = vector.multi_reduction <add>, %123, %cst_49 [1] : vector<64x256xf32> to vector<64xf32>
      %125 = vector.shape_cast %124 : vector<64xf32> to vector<64x1xf32>
      %cst_50 = arith.constant 3.906250e-03 : f32
      %126 = vector.broadcast %cst_50 : f32 to vector<64x1xf32>
      %127 = arith.mulf %125, %126 : vector<64x1xf32>
      %128 = arith.mulf %122, %122 : vector<64x1xf32>
      %129 = arith.subf %127, %128 : vector<64x1xf32>
      %cst_51 = arith.constant 9.99999974E-6 : f32
      %130 = vector.broadcast %cst_51 : f32 to vector<64x1xf32>
      %131 = arith.addf %129, %130 : vector<64x1xf32>
      %132 = math.rsqrt %131 : vector<64x1xf32>
      %133 = arith.mulf %132, %114 : vector<64x1xf32>
      %134 = vector.broadcast %122 : vector<64x1xf32> to vector<64x256xf32>
      %135 = arith.subf %110, %134 : vector<64x256xf32>
      %136 = vector.broadcast %133 : vector<64x1xf32> to vector<64x256xf32>
      %137 = arith.mulf %135, %136 : vector<64x256xf32>
      %138 = vector.broadcast %118 : vector<64x1xf32> to vector<64x256xf32>
      %139 = arith.addf %137, %138 : vector<64x256xf32>
      %140 = arith.addf %arg8, %139 : vector<64x256xf32>
      %cst_52 = arith.constant 0.000000e+00 : f32
      %141 = vector.broadcast %cst_52 : f32 to vector<64x256xf32>
      %142 = arith.maximumf %140, %141 : vector<64x256xf32>
      scf.yield %142 : vector<64x256xf32>
    }
    %c7_i32_12 = arith.constant 7 : i32
    %c0_13 = arith.constant 0 : index
    %c0_14 = arith.constant 0 : index
    %48 = vector.load %arg5[%c0_13, %c0_14] : memref<8x192xf32, #tpu.memory_space<vmem>>, vector<8x192xf32>
    %c1_i32_15 = arith.constant 1 : i32
    %49 = tpu.dynamic_rotate %47 by %c1_i32_15 dim 1 : vector<64x256xf32>, i32 -> vector<64x256xf32>
    %50 = vector.broadcast %20 : vector<1x256xf32> to vector<64x256xf32>
    %51 = arith.mulf %49, %50 : vector<64x256xf32>
    %c255_i32_16 = arith.constant 255 : i32
    %52 = tpu.dynamic_rotate %47 by %c255_i32_16 dim 1 : vector<64x256xf32>, i32 -> vector<64x256xf32>
    %53 = vector.broadcast %24 : vector<1x256xf32> to vector<64x256xf32>
    %54 = arith.mulf %52, %53 : vector<64x256xf32>
    %55 = tpu.concatenate %51, %47, %54 in 0 : vector<64x256xf32>, vector<64x256xf32>, vector<64x256xf32> -> vector<192x256xf32>
    %cst_17 = arith.constant dense<0.000000e+00> : vector<8x256xf32>
    %56 = tpu.matmul %48, %55, %cst_17 {dimension_numbers = #tpu.dot_dimension_numbers<[1], [0], [0], [1], [0, 0, 1, 1], [], []>} : vector<8x192xf32>, vector<192x256xf32>, vector<8x256xf32> -> vector<8x256xf32>
    %c0_18 = arith.constant 0 : index
    %c0_19 = arith.constant 0 : index
    %57 = vector.load %arg6[%c0_18, %c0_19] : memref<8x256xf32, #tpu.memory_space<vmem>>, vector<8x256xf32>
    tpu.vector_store %arg6[%c0_18, %c0_19], %56 {strides = array<i32>} : memref<8x256xf32, #tpu.memory_space<vmem>>, vector<8x256xf32>,
    return
  }
}

</mosaic_0001>

<llo_original>
// kernel: dncnn_forward.1
$region0: #{dncnn_forward.1}
  #allocation0 [shape = 'u32[]', space=smem, size = 0x4, offset = 0x4, fixed_abs, tag = 'smem constant byte address 0x4 - core index']
  #allocation1 [shape = 'u32[144,128]{1,0:T(1,128)}', space=vmem, size = 0x12000, scoped, tag = 'internal scratch']
  %s0 = inlined_call_operand.vmem [shape: f32[1,256], index: 0, kind: input, shape index: {}]
  %s1 = inlined_call_operand.vmem [shape: f32[64,3], index: 1, kind: input, shape index: {}]
  %s2 = inlined_call_operand.vmem [shape: f32[14,64,192], index: 2, kind: input, shape index: {}]
  %s3 = inlined_call_operand.vmem [shape: f32[14,64,1], index: 3, kind: input, shape index: {}]
  %s4 = inlined_call_operand.vmem [shape: f32[14,64,1], index: 4, kind: input, shape index: {}]
  %s5 = inlined_call_operand.vmem [shape: f32[8,192], index: 5, kind: input, shape index: {}]
  %s6 = inlined_call_operand.vmem [shape: f32[8,256], index: 6, kind: output, shape index: {}]
  %s7 = sld [smem:[#allocation0]]
  $region41: #{dncnn_forward.1} parent=0
    _
  %s9 = ssub.s32 1, %s7
  %s10 = scalar_select 0, %s9, %s7
  // Predicated region
  $region2: #{dncnn_forward.1} parent=0 // pred_check
    _
  $region3: #{dncnn_forward.1} parent=0 // pred_check_branch
    %12 = sbr.rel (0) target = $region5
  $region4: #{dncnn_forward.1} parent=0 // pred_region
    _
  $region5: #{dncnn_forward.1} parent=0 // pred_fallthru
    _
  // Predicated region
  $region6: #{dncnn_forward.1} parent=0 // pred_check
    _
  $region7: #{dncnn_forward.1} parent=0 // pred_check_branch
    %14 = sbr.rel (0) target = $region9
  $region8: #{dncnn_forward.1} parent=0 // pred_region
    _
  $region9: #{dncnn_forward.1} parent=0 // pred_fallthru
    _
  // Predicated region
  $region10: #{dncnn_forward.1} parent=0 // pred_check
    _
  $region11: #{dncnn_forward.1} parent=0 // pred_check_branch
    %16 = sbr.rel (0) target = $region13
  $region12: #{dncnn_forward.1} parent=0 // pred_region
    _
  $region13: #{dncnn_forward.1} parent=0 // pred_fallthru
    _
  // Predicated region
  $region14: #{dncnn_forward.1} parent=0 // pred_check
    _
  $region15: #{dncnn_forward.1} parent=0 // pred_check_branch
    %18 = sbr.rel (0) target = $region17
  $region16: #{dncnn_forward.1} parent=0 // pred_region
    _
  $region17: #{dncnn_forward.1} parent=0 // pred_fallthru
    _
  // Predicated region
  $region18: #{dncnn_forward.1} parent=0 // pred_check
    _
  $region19: #{dncnn_forward.1} parent=0 // pred_check_branch
    %20 = sbr.rel (0) target = $region21
  $region20: #{dncnn_forward.1} parent=0 // pred_region
    _
  $region21: #{dncnn_forward.1} parent=0 // pred_fallthru
    _
  // Predicated region
  $region22: #{dncnn_forward.1} parent=0 // pred_check
    _
  $region23: #{dncnn_forward.1} parent=0 // pred_check_branch
    %22 = sbr.rel (0) target = $region25
  $region24: #{dncnn_forward.1} parent=0 // pred_region
    _
  $region25: #{dncnn_forward.1} parent=0 // pred_fallthru
    _
  %v23 = vlaneseq
  %v24 = vand.u32 %v23, 127
  %v25 = vadd.s32 %v24, 128
  %vm26 = vcmp.lt.s32.totalorder %v24, 0
  %v27 = vsub.s32 0, %v24
  %v28 = vsel %vm26, %v27, %v24
  %v29 = vshrl.u32 %v28, 7
  %v30 = vand.u32 %v28, 127
  %v31 = vsub.s32 0, %v30
  %v32 = vsel %vm26, %v31, %v30
  %vm33 = vcmp.lt.s32.totalorder %v25, 0
  %v34 = vsub.s32 0, %v25
  %v35 = vsel %vm33, %v34, %v25
  %v36 = vshrl.u32 %v35, 7
  %v37 = vand.u32 %v35, 127
  %v38 = vsub.s32 0, %v37
  %v39 = vsel %vm33, %v38, %v37
  %vm40 = vcmp.ne.s32.totalorder %v32, 0
  %vm41 = vcmp.ne.s32.totalorder %v39, 0
  %vm42 = vcmp.lt.s32.totalorder %v32, 0
  %vm43 = vcmp.lt.s32.totalorder %v39, 0
  %vm44 = vmand %vm42, %vm40
  %vm45 = vmand %vm43, %vm41
  %v46 = vadd.s32 %v32, 128
  %v47 = vadd.s32 %v39, 128
  %v48 = vsel %vm44, %v46, %v32
  %v49 = vsel %vm45, %v47, %v39
  %vm50 = vcmp.ne.s32.totalorder %v48, 0
  %vm51 = vcmp.ne.s32.totalorder %v49, 0
  %v52 = vsel %vm50, 1, 0
  %v53 = vsel %vm51, 1, 0
  %v54 = vcvt.s32.f32 %v52
  %v55 = vcvt.s32.f32 %v53
  %vm56 = vcmp.ne.s32.totalorder %v48, 127
  %vm57 = vcmp.ne.s32.totalorder %v49, 127
  %v58 = vsel %vm56, 1, 0
  %v59 = vsel %vm57, 1, 0
  %v60 = vcvt.s32.f32 %v58
  %v61 = vcvt.s32.f32 %v59
  %v62 = vld [vmem:[%s0] sm:$0x3]
  %v64 = vlaneseq
  %v65 = vshrl.u32 %v64, 7
  %v66 = vsub.s32 0, %v65
  %v67 = vrot.slane %v62, %v66
  %v68 = vlaneseq
  %v69 = vshrl.u32 %v68, 7
  %v70 = vsub.s32 1, %v69
  %v71 = vrot.slane %v62, %v70
  %74 = vrot.lane.b32.xlu0 %v67, 1
  %v75 = vpop.permute.xlu0 %74
  %76 = vrot.lane.b32.xlu0 %v71, 1
  %v77 = vpop.permute.xlu0 %76
  %vm78 = vcmp.lt.s32.totalorder %v24, 1
  %v79 = vsel %vm78, %v75, %v77
  %v80 = vsel %vm78, %v77, %v75
  %v81 = vmul.f32 %v80, %v54
  %v82 = vmul.f32 %v79, %v55
  %83 = vrot.lane.b32.xlu0 %v67, 127
  %v84 = vpop.permute.xlu0 %83
  %85 = vrot.lane.b32.xlu0 %v71, 127
  %v86 = vpop.permute.xlu0 %85
  %vm87 = vcmp.lt.s32.totalorder %v24, 127
  %v88 = vsel %vm87, %v84, %v86
  %v89 = vsel %vm87, %v86, %v84
  %v90 = vmul.f32 %v88, %v60
  %v91 = vmul.f32 %v89, %v61
  %v92 = vld [vmem:[%s1] sm:$0xff]
  %v93 = vld [vmem:[%s1 + $0x8] sm:$0xff]
  %v94 = vld [vmem:[%s1 + $0x10] sm:$0xff]
  %v95 = vld [vmem:[%s1 + $0x18] sm:$0xff]
  %v96 = vld [vmem:[%s1 + $0x20] sm:$0xff]
  %v97 = vld [vmem:[%s1 + $0x28] sm:$0xff]
  %v98 = vld [vmem:[%s1 + $0x30] sm:$0xff]
  %v99 = vld [vmem:[%s1 + $0x38] sm:$0xff]
  %101 = vset.pattern.permute.xlu0 0
  %102 = vperm.xlu0 %101, %v92
  %v103 = vpop.permute.xlu0 %102
  %106 = vset.pattern.permute.xlu0 0
  %107 = vperm.xlu0 %106, %v93
  %v108 = vpop.permute.xlu0 %107
  %111 = vset.pattern.permute.xlu0 0
  %112 = vperm.xlu0 %111, %v94
  %v113 = vpop.permute.xlu0 %112
  %116 = vset.pattern.permute.xlu0 0
  %117 = vperm.xlu0 %116, %v95
  %v118 = vpop.permute.xlu0 %117
  %121 = vset.pattern.permute.xlu0 0
  %122 = vperm.xlu0 %121, %v96
  %v123 = vpop.permute.xlu0 %122
  %126 = vset.pattern.permute.xlu0 0
  %127 = vperm.xlu0 %126, %v97
  %v128 = vpop.permute.xlu0 %127
  %131 = vset.pattern.permute.xlu0 0
  %132 = vperm.xlu0 %131, %v98
  %v133 = vpop.permute.xlu0 %132
  %136 = vset.pattern.permute.xlu0 0
  %137 = vperm.xlu0 %136, %v99
  %v138 = vpop.permute.xlu0 %137
  %v140 = vlaneseq
  %v141 = vshrl.u32 %v140, 7
  %v142 = vsub.s32 0, %v141
  %v143 = vrot.slane %v81, %v142
  %v144 = vlaneseq
  %v145 = vshrl.u32 %v144, 7
  %v146 = vsub.s32 0, %v145
  %v147 = vrot.slane %v82, %v146
  %v148 = vmul.f32 %v103, %v143
  %v149 = vmul.f32 %v103, %v147
  %v150 = vmul.f32 %v108, %v143
  %v151 = vmul.f32 %v108, %v147
  %v152 = vmul.f32 %v113, %v143
  %v153 = vmul.f32 %v113, %v147
  %v154 = vmul.f32 %v118, %v143
  %v155 = vmul.f32 %v118, %v147
  %v156 = vmul.f32 %v123, %v143
  %v157 = vmul.f32 %v123, %v147
  %v158 = vmul.f32 %v128, %v143
  %v159 = vmul.f32 %v128, %v147
  %v160 = vmul.f32 %v133, %v143
  %v161 = vmul.f32 %v133, %v147
  %v162 = vmul.f32 %v138, %v143
  %v163 = vmul.f32 %v138, %v147
  %164 = vset.pattern.permute.xlu0 1
  %165 = vperm.xlu0 %164, %v92
  %v166 = vpop.permute.xlu0 %165
  %168 = vset.pattern.permute.xlu0 1
  %169 = vperm.xlu0 %168, %v93
  %v170 = vpop.permute.xlu0 %169
  %172 = vset.pattern.permute.xlu0 1
  %173 = vperm.xlu0 %172, %v94
  %v174 = vpop.permute.xlu0 %173
  %176 = vset.pattern.permute.xlu0 1
  %177 = vperm.xlu0 %176, %v95
  %v178 = vpop.permute.xlu0 %177
  %180 = vset.pattern.permute.xlu0 1
  %181 = vperm.xlu0 %180, %v96
  %v182 = vpop.permute.xlu0 %181
  %184 = vset.pattern.permute.xlu0 1
  %185 = vperm.xlu0 %184, %v97
  %v186 = vpop.permute.xlu0 %185
  %188 = vset.pattern.permute.xlu0 1
  %189 = vperm.xlu0 %188, %v98
  %v190 = vpop.permute.xlu0 %189
  %192 = vset.pattern.permute.xlu0 1
  %193 = vperm.xlu0 %192, %v99
  %v194 = vpop.permute.xlu0 %193
  %v196 = vmul.f32 %v166, %v67
  %v197 = vmul.f32 %v166, %v71
  %v198 = vmul.f32 %v170, %v67
  %v199 = vmul.f32 %v170, %v71
  %v200 = vmul.f32 %v174, %v67
  %v201 = vmul.f32 %v174, %v71
  %v202 = vmul.f32 %v178, %v67
  %v203 = vmul.f32 %v178, %v71
  %v204 = vmul.f32 %v182, %v67
  %v205 = vmul.f32 %v182, %v71
  %v206 = vmul.f32 %v186, %v67
  %v207 = vmul.f32 %v186, %v71
  %v208 = vmul.f32 %v190, %v67
  %v209 = vmul.f32 %v190, %v71
  %v210 = vmul.f32 %v194, %v67
  %v211 = vmul.f32 %v194, %v71
  %v212 = vadd.f32 %v148, %v196
  %v213 = vadd.f32 %v149, %v197
  %v214 = vadd.f32 %v150, %v198
  %v215 = vadd.f32 %v151, %v199
  %v216 = vadd.f32 %v152, %v200
  %v217 = vadd.f32 %v153, %v201
  %v218 = vadd.f32 %v154, %v202
  %v219 = vadd.f32 %v155, %v203
  %v220 = vadd.f32 %v156, %v204
  %v221 = vadd.f32 %v157, %v205
  %v222 = vadd.f32 %v158, %v206
  %v223 = vadd.f32 %v159, %v207
  %v224 = vadd.f32 %v160, %v208
  %v225 = vadd.f32 %v161, %v209
  %v226 = vadd.f32 %v162, %v210
  %v227 = vadd.f32 %v163, %v211
  %228 = vset.pattern.permute.xlu0 2
  %229 = vperm.xlu0 %228, %v92
  %v230 = vpop.permute.xlu0 %229
  %232 = vset.pattern.permute.xlu0 2
  %233 = vperm.xlu0 %232, %v93
  %v234 = vpop.permute.xlu0 %233
  %236 = vset.pattern.permute.xlu0 2
  %237 = vperm.xlu0 %236, %v94
  %v238 = vpop.permute.xlu0 %237
  %240 = vset.pattern.permute.xlu0 2
  %241 = vperm.xlu0 %240, %v95
  %v242 = vpop.permute.xlu0 %241
  %244 = vset.pattern.permute.xlu0 2
  %245 = vperm.xlu0 %244, %v96
  %v246 = vpop.permute.xlu0 %245
  %248 = vset.pattern.permute.xlu0 2
  %249 = vperm.xlu0 %248, %v97
  %v250 = vpop.permute.xlu0 %249
  %252 = vset.pattern.permute.xlu0 2
  %253 = vperm.xlu0 %252, %v98
  %v254 = vpop.permute.xlu0 %253
  %256 = vset.pattern.permute.xlu0 2
  %257 = vperm.xlu0 %256, %v99
  %v258 = vpop.permute.xlu0 %257
  %v260 = vlaneseq
  %v261 = vshrl.u32 %v260, 7
  %v262 = vsub.s32 0, %v261
  %v263 = vrot.slane %v90, %v262
  %v264 = vlaneseq
  %v265 = vshrl.u32 %v264, 7
  %v266 = vsub.s32 0, %v265
  %v267 = vrot.slane %v91, %v266
  %v268 = vmul.f32 %v230, %v263
  %v269 = vmul.f32 %v230, %v267
  %v270 = vmul.f32 %v234, %v263
  %v271 = vmul.f32 %v234, %v267
  %v272 = vmul.f32 %v238, %v263
  %v273 = vmul.f32 %v238, %v267
  %v274 = vmul.f32 %v242, %v263
  %v275 = vmul.f32 %v242, %v267
  %v276 = vmul.f32 %v246, %v263
  %v277 = vmul.f32 %v246, %v267
  %v278 = vmul.f32 %v250, %v263
  %v279 = vmul.f32 %v250, %v267
  %v280 = vmul.f32 %v254, %v263
  %v281 = vmul.f32 %v254, %v267
  %v282 = vmul.f32 %v258, %v263
  %v283 = vmul.f32 %v258, %v267
  %v284 = vadd.f32 %v212, %v268
  %v285 = vadd.f32 %v213, %v269
  %v286 = vadd.f32 %v214, %v270
  %v287 = vadd.f32 %v215, %v271
  %v288 = vadd.f32 %v216, %v272
  %v289 = vadd.f32 %v217, %v273
  %v290 = vadd.f32 %v218, %v274
  %v291 = vadd.f32 %v219, %v275
  %v292 = vadd.f32 %v220, %v276
  %v293 = vadd.f32 %v221, %v277
  %v294 = vadd.f32 %v222, %v278
  %v295 = vadd.f32 %v223, %v279
  %v296 = vadd.f32 %v224, %v280
  %v297 = vadd.f32 %v225, %v281
  %v298 = vadd.f32 %v226, %v282
  %v299 = vadd.f32 %v227, %v283
  %v300 = vmax.f32 %v284, 0.0
  %v301 = vmax.f32 %v285, 0.0
  %v302 = vmax.f32 %v286, 0.0
  %v303 = vmax.f32 %v287, 0.0
  %v304 = vmax.f32 %v288, 0.0
  %v305 = vmax.f32 %v289, 0.0
  %v306 = vmax.f32 %v290, 0.0
  %v307 = vmax.f32 %v291, 0.0
  %v308 = vmax.f32 %v292, 0.0
  %v309 = vmax.f32 %v293, 0.0
  %v310 = vmax.f32 %v294, 0.0
  %v311 = vmax.f32 %v295, 0.0
  %v312 = vmax.f32 %v296, 0.0
  %v313 = vmax.f32 %v297, 0.0
  %v314 = vmax.f32 %v298, 0.0
  %v315 = vmax.f32 %v299, 0.0
  loop: start=0, step=1, limit=7
  $region26: #{dncnn_forward.1} parent=0 // loop_pre_header
    _
  $region27: #{dncnn_forward.1} parent=0 // loop_header
    %s317 = sphi 0, %s321
    %p318 = scmp.ge.s32.totalorder %s317, 7
    %v322 = vphi %v300, %v1475
    %v323 = vphi %v301, %v1476
    %v324 = vphi %v302, %v1477
    %v325 = vphi %v303, %v1478
    %v326 = vphi %v304, %v1479
    %v327 = vphi %v305, %v1480
    %v328 = vphi %v306, %v1481
    %v329 = vphi %v307, %v1482
    %v330 = vphi %v308, %v1483
    %v331 = vphi %v309, %v1484
    %v332 = vphi %v310, %v1485
    %v333 = vphi %v311, %v1486
    %v334 = vphi %v312, %v1487
    %v335 = vphi %v313, %v1488
    %v336 = vphi %v314, %v1489
    %v337 = vphi %v315, %v1490
  $region28: #{dncnn_forward.1} parent=0 // loop_header_branch
    %320 = sbr.rel (%p318) target = $region32
  $region29: #{dncnn_forward.1} parent=0 // loop_body
    %s338 = smul.u32 %s317, 2
    %s339 = smul.u32 %s338, 16
    %s340 = smul.addr %s339, 8
    %s341 = scalar_lea.vmem %s2, %s340
    %v342 = vld [vmem:[%s341] sm:$0xff]
    %v343 = vld [vmem:[%s341 + $0x8] sm:$0xff]
    %v344 = vld [vmem:[%s341 + $0x10] sm:$0xff]
    %v345 = vld [vmem:[%s341 + $0x18] sm:$0xff]
    %v346 = vld [vmem:[%s341 + $0x20] sm:$0xff]
    %v347 = vld [vmem:[%s341 + $0x28] sm:$0xff]
    %v348 = vld [vmem:[%s341 + $0x30] sm:$0xff]
    %v349 = vld [vmem:[%s341 + $0x38] sm:$0xff]
    %v350 = vld [vmem:[%s341 + $0x40] sm:$0xff]
    %v351 = vld [vmem:[%s341 + $0x48] sm:$0xff]
    %v352 = vld [vmem:[%s341 + $0x50] sm:$0xff]
    %v353 = vld [vmem:[%s341 + $0x58] sm:$0xff]
    %v354 = vld [vmem:[%s341 + $0x60] sm:$0xff]
    %v355 = vld [vmem:[%s341 + $0x68] sm:$0xff]
    %v356 = vld [vmem:[%s341 + $0x70] sm:$0xff]
    %v357 = vld [vmem:[%s341 + $0x78] sm:$0xff]
    %358 = vrot.lane.b32.xlu0 %v322, 1
    %v359 = vpop.permute.xlu0 %358
    %360 = vrot.lane.b32.xlu0 %v324, 1
    %v361 = vpop.permute.xlu0 %360
    %362 = vrot.lane.b32.xlu0 %v326, 1
    %v363 = vpop.permute.xlu0 %362
    %364 = vrot.lane.b32.xlu0 %v328, 1
    %v365 = vpop.permute.xlu0 %364
    %366 = vrot.lane.b32.xlu0 %v330, 1
    %v367 = vpop.permute.xlu0 %366
    %368 = vrot.lane.b32.xlu0 %v332, 1
    %v369 = vpop.permute.xlu0 %368
    %370 = vrot.lane.b32.xlu0 %v334, 1
    %v371 = vpop.permute.xlu0 %370
    %372 = vrot.lane.b32.xlu0 %v336, 1
    %v373 = vpop.permute.xlu0 %372
    %374 = vrot.lane.b32.xlu0 %v323, 1
    %v375 = vpop.permute.xlu0 %374
    %376 = vrot.lane.b32.xlu0 %v325, 1
    %v377 = vpop.permute.xlu0 %376
    %378 = vrot.lane.b32.xlu0 %v327, 1
    %v379 = vpop.permute.xlu0 %378
    %380 = vrot.lane.b32.xlu0 %v329, 1
    %v381 = vpop.permute.xlu0 %380
    %382 = vrot.lane.b32.xlu0 %v331, 1
    %v383 = vpop.permute.xlu0 %382
    %384 = vrot.lane.b32.xlu0 %v333, 1
    %v385 = vpop.permute.xlu0 %384
    %386 = vrot.lane.b32.xlu0 %v335, 1
    %v387 = vpop.permute.xlu0 %386
    %388 = vrot.lane.b32.xlu0 %v337, 1
    %v389 = vpop.permute.xlu0 %388
    %v390 = vsel %vm78, %v359, %v375
    %v391 = vsel %vm78, %v361, %v377
    %v392 = vsel %vm78, %v363, %v379
    %v393 = vsel %vm78, %v365, %v381
    %v394 = vsel %vm78, %v367, %v383
    %v395 = vsel %vm78, %v369, %v385
    %v396 = vsel %vm78, %v371, %v387
    %v397 = vsel %vm78, %v373, %v389
    %v398 = vsel %vm78, %v375, %v359
    %v399 = vsel %vm78, %v377, %v361
    %v400 = vsel %vm78, %v379, %v363
    %v401 = vsel %vm78, %v381, %v365
    %v402 = vsel %vm78, %v383, %v367
    %v403 = vsel %vm78, %v385, %v369
    %v404 = vsel %vm78, %v387, %v371
    %v405 = vsel %vm78, %v389, %v373
    %v406 = vmul.f32 %v398, %v54
    %v407 = vmul.f32 %v390, %v55
    %v408 = vmul.f32 %v399, %v54
    %v409 = vmul.f32 %v391, %v55
    %v410 = vmul.f32 %v400, %v54
    %v411 = vmul.f32 %v392, %v55
    %v412 = vmul.f32 %v401, %v54
    %v413 = vmul.f32 %v393, %v55
    %v414 = vmul.f32 %v402, %v54
    %v415 = vmul.f32 %v394, %v55
    %v416 = vmul.f32 %v403, %v54
    %v417 = vmul.f32 %v395, %v55
    %v418 = vmul.f32 %v404, %v54
    %v419 = vmul.f32 %v396, %v55
    %v420 = vmul.f32 %v405, %v54
    %v421 = vmul.f32 %v397, %v55
    %422 = vrot.lane.b32.xlu0 %v322, 127
    %v423 = vpop.permute.xlu0 %422
    %424 = vrot.lane.b32.xlu0 %v324, 127
    %v425 = vpop.permute.xlu0 %424
    %426 = vrot.lane.b32.xlu0 %v326, 127
    %v427 = vpop.permute.xlu0 %426
    %428 = vrot.lane.b32.xlu0 %v328, 127
    %v429 = vpop.permute.xlu0 %428
    %430 = vrot.lane.b32.xlu0 %v330, 127
    %v431 = vpop.permute.xlu0 %430
    %432 = vrot.lane.b32.xlu0 %v332, 127
    %v433 = vpop.permute.xlu0 %432
    %434 = vrot.lane.b32.xlu0 %v334, 127
    %v435 = vpop.permute.xlu0 %434
    %436 = vrot.lane.b32.xlu0 %v336, 127
    %v437 = vpop.permute.xlu0 %436
    %438 = vrot.lane.b32.xlu0 %v323, 127
    %v439 = vpop.permute.xlu0 %438
    %440 = vrot.lane.b32.xlu0 %v325, 127
    %v441 = vpop.permute.xlu0 %440
    %442 = vrot.lane.b32.xlu0 %v327, 127
    %v443 = vpop.permute.xlu0 %442
    %444 = vrot.lane.b32.xlu0 %v329, 127
    %v445 = vpop.permute.xlu0 %444
    %446 = vrot.lane.b32.xlu0 %v331, 127
    %v447 = vpop.permute.xlu0 %446
    %448 = vrot.lane.b32.xlu0 %v333, 127
    %v449 = vpop.permute.xlu0 %448
    %450 = vrot.lane.b32.xlu0 %v335, 127
    %v451 = vpop.permute.xlu0 %450
    %452 = vrot.lane.b32.xlu0 %v337, 127
    %v453 = vpop.permute.xlu0 %452
    %v454 = vsel %vm87, %v423, %v439
    %v455 = vsel %vm87, %v425, %v441
    %v456 = vsel %vm87, %v427, %v443
    %v457 = vsel %vm87, %v429, %v445
    %v458 = vsel %vm87, %v431, %v447
    %v459 = vsel %vm87, %v433, %v449
    %v460 = vsel %vm87, %v435, %v451
    %v461 = vsel %vm87, %v437, %v453
    %v462 = vsel %vm87, %v439, %v423
    %v463 = vsel %vm87, %v441, %v425
    %v464 = vsel %vm87, %v443, %v427
    %v465 = vsel %vm87, %v445, %v429
    %v466 = vsel %vm87, %v447, %v431
    %v467 = vsel %vm87, %v449, %v433
    %v468 = vsel %vm87, %v451, %v435
    %v469 = vsel %vm87, %v453, %v437
    %v470 = vmul.f32 %v454, %v60
    %v471 = vmul.f32 %v462, %v61
    %v472 = vmul.f32 %v455, %v60
    %v473 = vmul.f32 %v463, %v61
    %v474 = vmul.f32 %v456, %v60
    %v475 = vmul.f32 %v464, %v61
    %v476 = vmul.f32 %v457, %v60
    %v477 = vmul.f32 %v465, %v61
    %v478 = vmul.f32 %v458, %v60
    %v479 = vmul.f32 %v466, %v61
    %v480 = vmul.f32 %v459, %v60
    %v481 = vmul.f32 %v467, %v61
    %v482 = vmul.f32 %v460, %v60
    %v483 = vmul.f32 %v468, %v61
    %v484 = vmul.f32 %v461, %v60
    %v485 = vmul.f32 %v469, %v61
    %vm486 = vcmask 523264
    %v488 = vsel %vm486, %v343, 0
    %v491 = vsel %vm486, %v345, 0
    %v494 = vsel %vm486, %v347, 0
    %v497 = vsel %vm486, %v349, 0
    %v500 = vsel %vm486, %v351, 0
    %v503 = vsel %vm486, %v353, 0
    %v506 = vsel %vm486, %v355, 0
    %v509 = vsel %vm486, %v357, 0
    %511 = vmatprep.subr.mxu0 %v337
    %512 = vmatpush1.msra.mxu0 %v336
    %513 = vmatprep.subr.mxu0 %v335
    %514 = vmatpush1.msra.mxu0 %v334
    %515 = vmatprep.subr.mxu0 %v333
    %516 = vmatpush1.msra.mxu0 %v332
    %517 = vmatprep.subr.mxu0 %v331
    %518 = vmatpush1.msra.mxu0 %v330
    %519 = vmatprep.subr.mxu0 %v329
    %520 = vmatpush1.msra.mxu0 %v328
    %521 = vmatprep.subr.mxu0 %v327
    %522 = vmatpush1.msra.mxu0 %v326
    %523 = vmatprep.subr.mxu0 %v325
    %524 = vmatpush1.msra.mxu0 %v324
    %525 = vmatprep.subr.mxu0 %v323
    %526 = vmatpush1.msra.mxu0 %v322
    %527 = vmatprep.subr.mxu0 %v421
    %528 = vmatpush1.msra.mxu0 %v420
    %529 = vmatprep.subr.mxu0 %v419
    %530 = vmatpush1.msra.mxu0 %v418
    %531 = vmatprep.subr.mxu0 %v417
    %532 = vmatpush1.msra.mxu0 %v416
    %533 = vmatprep.subr.mxu0 %v415
    %534 = vmatpush1.msra.mxu0 %v414
    %535 = vmatprep.subr.mxu0 %v413
    %536 = vmatpush1.msra.mxu0 %v412
    %537 = vmatprep.subr.mxu0 %v411
    %538 = vmatpush1.msra.mxu0 %v410
    %539 = vmatprep.subr.mxu0 %v409
    %540 = vmatpush1.msra.mxu0 %v408
    %541 = vmatprep.subr.mxu0 %v407
    %542 = vmatpush1.msra.mxu0 %v406
    %543 = vmatprep.subr.mxu0 0.0
    %544 = vmatpush2.msra.mxu0 0.0
    %545 = vmatprep.subr.mxu0 0.0
    %546 = vmatpush2.msra.mxu0 0.0
    %547 = vmatprep.subr.mxu0 0.0
    %548 = vmatpush2.msra.mxu0 0.0
    %549 = vmatprep.subr.mxu0 0.0
    %550 = vmatpush2.msra.mxu0 0.0
    %551 = vmatprep.subr.mxu0 0.0
    %552 = vmatpush2.msra.mxu0 0.0
    %553 = vmatprep.subr.mxu0 0.0
    %554 = vmatpush2.msra.mxu0 0.0
    %555 = vmatprep.subr.mxu0 0.0
    %556 = vmatpush2.msra.mxu0 0.0
    %557 = vmatprep.subr.mxu0 0.0
    %558 = vmatpush2.msra.mxu0 0.0
    %559 = vmatprep.subr.mxu0 %v485
    %560 = vmatpush2.msra.mxu0 %v484
    %561 = vmatprep.subr.mxu0 %v483
    %562 = vmatpush2.msra.mxu0 %v482
    %563 = vmatprep.subr.mxu0 %v481
    %564 = vmatpush2.msra.mxu0 %v480
    %565 = vmatprep.subr.mxu0 %v479
    %566 = vmatpush2.msra.mxu0 %v478
    %567 = vmatprep.subr.mxu0 %v477
    %568 = vmatpush2.msra.mxu0 %v476
    %569 = vmatprep.subr.mxu0 %v475
    %570 = vmatpush2.msra.mxu0 %v474
    %571 = vmatprep.subr.mxu0 %v473
    %572 = vmatpush2.msra.mxu0 %v472
    %573 = vmatprep.subr.mxu0 %v471
    %574 = vmatpush2.msra.mxu0 %v470
    %575 = vmatprep.mubr.f32.mxu0 %v488
    %576 = vmatmul.mubr.f32.gmra.mxu0 %v342
    %v577 = vpop.f32.mrf.mxu0
    %v578 = vadd.f32 0.0, %v577
    %v579 = vpop.f32.mrf.mxu0
    %v580 = vadd.f32 0.0, %v579
    %581 = vmatprep.mubr.f32.mxu0 %v491
    %582 = vmatmul.mubr.f32.gmra.mxu0 %v344
    %v583 = vpop.f32.mrf.mxu0
    %v584 = vadd.f32 0.0, %v583
    %v585 = vpop.f32.mrf.mxu0
    %v586 = vadd.f32 0.0, %v585
    %587 = vmatprep.mubr.f32.mxu0 %v494
    %588 = vmatmul.mubr.f32.gmra.mxu0 %v346
    %v589 = vpop.f32.mrf.mxu0
    %v590 = vadd.f32 0.0, %v589
    %v591 = vpop.f32.mrf.mxu0
    %v592 = vadd.f32 0.0, %v591
    %593 = vmatprep.mubr.f32.mxu0 %v497
    %594 = vmatmul.mubr.f32.gmra.mxu0 %v348
    %v595 = vpop.f32.mrf.mxu0
    %v596 = vadd.f32 0.0, %v595
    %v597 = vpop.f32.mrf.mxu0
    %v598 = vadd.f32 0.0, %v597
    %599 = vmatprep.mubr.f32.mxu0 %v500
    %600 = vmatmul.mubr.f32.gmra.mxu0 %v350
    %v601 = vpop.f32.mrf.mxu0
    %v602 = vadd.f32 0.0, %v601
    %v603 = vpop.f32.mrf.mxu0
    %v604 = vadd.f32 0.0, %v603
    %605 = vmatprep.mubr.f32.mxu0 %v503
    %606 = vmatmul.mubr.f32.gmra.mxu0 %v352
    %v607 = vpop.f32.mrf.mxu0
    %v608 = vadd.f32 0.0, %v607
    %v609 = vpop.f32.mrf.mxu0
    %v610 = vadd.f32 0.0, %v609
    %611 = vmatprep.mubr.f32.mxu0 %v506
    %612 = vmatmul.mubr.f32.gmra.mxu0 %v354
    %v613 = vpop.f32.mrf.mxu0
    %v614 = vadd.f32 0.0, %v613
    %v615 = vpop.f32.mrf.mxu0
    %v616 = vadd.f32 0.0, %v615
    %617 = vmatprep.mubr.f32.mxu0 %v509
    %618 = vmatmul.mubr.f32.gmra.mxu0 %v356
    %v619 = vpop.f32.mrf.mxu0
    %v620 = vadd.f32 0.0, %v619
    %v621 = vpop.f32.mrf.mxu0
    %v622 = vadd.f32 0.0, %v621
    %623 = vdwg.mxu0
    %s624 = smul.u32 %s338, 64
    %s625 = scalar_lea.vmem %s3, %s624
    %v626 = vld [vmem:[%s625] sm:$0xff]
    %v627 = vld [vmem:[%s625 + $0x8] sm:$0xff]
    %v628 = vld [vmem:[%s625 + $0x10] sm:$0xff]
    %v629 = vld [vmem:[%s625 + $0x18] sm:$0xff]
    %v630 = vld [vmem:[%s625 + $0x20] sm:$0xff]
    %v631 = vld [vmem:[%s625 + $0x28] sm:$0xff]
    %v632 = vld [vmem:[%s625 + $0x30] sm:$0xff]
    %v633 = vld [vmem:[%s625 + $0x38] sm:$0xff]
    %s634 = scalar_lea.vmem %s4, %s624
    %v635 = vld [vmem:[%s634] sm:$0xff]
    %v636 = vld [vmem:[%s634 + $0x8] sm:$0xff]
    %v637 = vld [vmem:[%s634 + $0x10] sm:$0xff]
    %v638 = vld [vmem:[%s634 + $0x18] sm:$0xff]
    %v639 = vld [vmem:[%s634 + $0x20] sm:$0xff]
    %v640 = vld [vmem:[%s634 + $0x28] sm:$0xff]
    %v641 = vld [vmem:[%s634 + $0x30] sm:$0xff]
    %v642 = vld [vmem:[%s634 + $0x38] sm:$0xff]
    %v643 = vadd.f32 %v578, %v580
    %644 = vadd.xlane.f32.xlu0 %v643
    %v645 = vpop.xlane.xlu0 %644
    %v646 = vadd.f32 %v584, %v586
    %647 = vadd.xlane.f32.xlu0 %v646
    %v648 = vpop.xlane.xlu0 %647
    %v649 = vadd.f32 %v590, %v592
    %650 = vadd.xlane.f32.xlu0 %v649
    %v651 = vpop.xlane.xlu0 %650
    %v652 = vadd.f32 %v596, %v598
    %653 = vadd.xlane.f32.xlu0 %v652
    %v654 = vpop.xlane.xlu0 %653
    %v655 = vadd.f32 %v602, %v604
    %656 = vadd.xlane.f32.xlu0 %v655
    %v657 = vpop.xlane.xlu0 %656
    %v658 = vadd.f32 %v608, %v610
    %659 = vadd.xlane.f32.xlu0 %v658
    %v660 = vpop.xlane.xlu0 %659
    %v661 = vadd.f32 %v614, %v616
    %662 = vadd.xlane.f32.xlu0 %v661
    %v663 = vpop.xlane.xlu0 %662
    %v664 = vadd.f32 %v620, %v622
    %665 = vadd.xlane.f32.xlu0 %v664
    %v666 = vpop.xlane.xlu0 %665
    %v667 = vmul.f32 %v645, 0.00390625
    %v668 = vmul.f32 %v648, 0.00390625
    %v669 = vmul.f32 %v651, 0.00390625
    %v670 = vmul.f32 %v654, 0.00390625
    %v671 = vmul.f32 %v657, 0.00390625
    %v672 = vmul.f32 %v660, 0.00390625
    %v673 = vmul.f32 %v663, 0.00390625
    %v674 = vmul.f32 %v666, 0.00390625
    %v675 = vmul.f32 %v578, %v578
    %v676 = vmul.f32 %v580, %v580
    %v677 = vmul.f32 %v584, %v584
    %v678 = vmul.f32 %v586, %v586
    %v679 = vmul.f32 %v590, %v590
    %v680 = vmul.f32 %v592, %v592
    %v681 = vmul.f32 %v596, %v596
    %v682 = vmul.f32 %v598, %v598
    %v683 = vmul.f32 %v602, %v602
    %v684 = vmul.f32 %v604, %v604
    %v685 = vmul.f32 %v608, %v608
    %v686 = vmul.f32 %v610, %v610
    %v687 = vmul.f32 %v614, %v614
    %v688 = vmul.f32 %v616, %v616
    %v689 = vmul.f32 %v620, %v620
    %v690 = vmul.f32 %v622, %v622
    %v691 = vadd.f32 %v675, %v676
    %692 = vadd.xlane.f32.xlu0 %v691
    %v693 = vpop.xlane.xlu0 %692
    %v694 = vadd.f32 %v677, %v678
    %695 = vadd.xlane.f32.xlu0 %v694
    %v696 = vpop.xlane.xlu0 %695
    %v697 = vadd.f32 %v679, %v680
    %698 = vadd.xlane.f32.xlu0 %v697
    %v699 = vpop.xlane.xlu0 %698
    %v700 = vadd.f32 %v681, %v682
    %701 = vadd.xlane.f32.xlu0 %v700
    %v702 = vpop.xlane.xlu0 %701
    %v703 = vadd.f32 %v683, %v684
    %704 = vadd.xlane.f32.xlu0 %v703
    %v705 = vpop.xlane.xlu0 %704
    %v706 = vadd.f32 %v685, %v686
    %707 = vadd.xlane.f32.xlu0 %v706
    %v708 = vpop.xlane.xlu0 %707
    %v709 = vadd.f32 %v687, %v688
    %710 = vadd.xlane.f32.xlu0 %v709
    %v711 = vpop.xlane.xlu0 %710
    %v712 = vadd.f32 %v689, %v690
    %713 = vadd.xlane.f32.xlu0 %v712
    %v714 = vpop.xlane.xlu0 %713
    %v715 = vmul.f32 %v693, 0.00390625
    %v716 = vmul.f32 %v696, 0.00390625
    %v717 = vmul.f32 %v699, 0.00390625
    %v718 = vmul.f32 %v702, 0.00390625
    %v719 = vmul.f32 %v705, 0.00390625
    %v720 = vmul.f32 %v708, 0.00390625
    %v721 = vmul.f32 %v711, 0.00390625
    %v722 = vmul.f32 %v714, 0.00390625
    %v723 = vmul.f32 %v667, %v667
    %v724 = vmul.f32 %v668, %v668
    %v725 = vmul.f32 %v669, %v669
    %v726 = vmul.f32 %v670, %v670
    %v727 = vmul.f32 %v671, %v671
    %v728 = vmul.f32 %v672, %v672
    %v729 = vmul.f32 %v673, %v673
    %v730 = vmul.f32 %v674, %v674
    %v731 = vsub.f32 %v715, %v723
    %v732 = vsub.f32 %v716, %v724
    %v733 = vsub.f32 %v717, %v725
    %v734 = vsub.f32 %v718, %v726
    %v735 = vsub.f32 %v719, %v727
    %v736 = vsub.f32 %v720, %v728
    %v737 = vsub.f32 %v721, %v729
    %v738 = vsub.f32 %v722, %v730
    %v739 = vadd.f32 %v731, 1e-05
    %v740 = vadd.f32 %v732, 1e-05
    %v741 = vadd.f32 %v733, 1e-05
    %v742 = vadd.f32 %v734, 1e-05
    %v743 = vadd.f32 %v735, 1e-05
    %v744 = vadd.f32 %v736, 1e-05
    %v745 = vadd.f32 %v737, 1e-05
    %v746 = vadd.f32 %v738, 1e-05
    %v747 = vrsqrt.pop %v739
    %v748 = vrsqrt.pop %v740
    %v749 = vrsqrt.pop %v741
    %v750 = vrsqrt.pop %v742
    %v751 = vrsqrt.pop %v743
    %v752 = vrsqrt.pop %v744
    %v753 = vrsqrt.pop %v745
    %v754 = vrsqrt.pop %v746
    %v755 = vmul.f32 %v747, %v626
    %v756 = vmul.f32 %v748, %v627
    %v757 = vmul.f32 %v749, %v628
    %v758 = vmul.f32 %v750, %v629
    %v759 = vmul.f32 %v751, %v630
    %v760 = vmul.f32 %v752, %v631
    %v761 = vmul.f32 %v753, %v632
    %v762 = vmul.f32 %v754, %v633
    %v763 = vsub.f32 %v578, %v667
    %v764 = vsub.f32 %v580, %v667
    %v765 = vsub.f32 %v584, %v668
    %v766 = vsub.f32 %v586, %v668
    %v767 = vsub.f32 %v590, %v669
    %v768 = vsub.f32 %v592, %v669
    %v769 = vsub.f32 %v596, %v670
    %v770 = vsub.f32 %v598, %v670
    %v771 = vsub.f32 %v602, %v671
    %v772 = vsub.f32 %v604, %v671
    %v773 = vsub.f32 %v608, %v672
    %v774 = vsub.f32 %v610, %v672
    %v775 = vsub.f32 %v614, %v673
    %v776 = vsub.f32 %v616, %v673
    %v777 = vsub.f32 %v620, %v674
    %v778 = vsub.f32 %v622, %v674
    %780 = vset.pattern.permute.xlu0 0
    %781 = vperm.xlu0 %780, %v755
    %v782 = vpop.permute.xlu0 %781
    %785 = vset.pattern.permute.xlu0 0
    %786 = vperm.xlu0 %785, %v756
    %v787 = vpop.permute.xlu0 %786
    %790 = vset.pattern.permute.xlu0 0
    %791 = vperm.xlu0 %790, %v757
    %v792 = vpop.permute.xlu0 %791
    %795 = vset.pattern.permute.xlu0 0
    %796 = vperm.xlu0 %795, %v758
    %v797 = vpop.permute.xlu0 %796
    %800 = vset.pattern.permute.xlu0 0
    %801 = vperm.xlu0 %800, %v759
    %v802 = vpop.permute.xlu0 %801
    %805 = vset.pattern.permute.xlu0 0
    %806 = vperm.xlu0 %805, %v760
    %v807 = vpop.permute.xlu0 %806
    %810 = vset.pattern.permute.xlu0 0
    %811 = vperm.xlu0 %810, %v761
    %v812 = vpop.permute.xlu0 %811
    %815 = vset.pattern.permute.xlu0 0
    %816 = vperm.xlu0 %815, %v762
    %v817 = vpop.permute.xlu0 %816
    %v819 = vmul.f32 %v763, %v782
    %v820 = vmul.f32 %v764, %v782
    %v821 = vmul.f32 %v765, %v787
    %v822 = vmul.f32 %v766, %v787
    %v823 = vmul.f32 %v767, %v792
    %v824 = vmul.f32 %v768, %v792
    %v825 = vmul.f32 %v769, %v797
    %v826 = vmul.f32 %v770, %v797
    %v827 = vmul.f32 %v771, %v802
    %v828 = vmul.f32 %v772, %v802
    %v829 = vmul.f32 %v773, %v807
    %v830 = vmul.f32 %v774, %v807
    %v831 = vmul.f32 %v775, %v812
    %v832 = vmul.f32 %v776, %v812
    %v833 = vmul.f32 %v777, %v817
    %v834 = vmul.f32 %v778, %v817
    %836 = vset.pattern.permute.xlu0 0
    %837 = vperm.xlu0 %836, %v635
    %v838 = vpop.permute.xlu0 %837
    %841 = vset.pattern.permute.xlu0 0
    %842 = vperm.xlu0 %841, %v636
    %v843 = vpop.permute.xlu0 %842
    %846 = vset.pattern.permute.xlu0 0
    %847 = vperm.xlu0 %846, %v637
    %v848 = vpop.permute.xlu0 %847
    %851 = vset.pattern.permute.xlu0 0
    %852 = vperm.xlu0 %851, %v638
    %v853 = vpop.permute.xlu0 %852
    %856 = vset.pattern.permute.xlu0 0
    %857 = vperm.xlu0 %856, %v639
    %v858 = vpop.permute.xlu0 %857
    %861 = vset.pattern.permute.xlu0 0
    %862 = vperm.xlu0 %861, %v640
    %v863 = vpop.permute.xlu0 %862
    %866 = vset.pattern.permute.xlu0 0
    %867 = vperm.xlu0 %866, %v641
    %v868 = vpop.permute.xlu0 %867
    %871 = vset.pattern.permute.xlu0 0
    %872 = vperm.xlu0 %871, %v642
    %v873 = vpop.permute.xlu0 %872
    %v875 = vadd.f32 %v819, %v838
    %v876 = vadd.f32 %v820, %v838
    %v877 = vadd.f32 %v821, %v843
    %v878 = vadd.f32 %v822, %v843
    %v879 = vadd.f32 %v823, %v848
    %v880 = vadd.f32 %v824, %v848
    %v881 = vadd.f32 %v825, %v853
    %v882 = vadd.f32 %v826, %v853
    %v883 = vadd.f32 %v827, %v858
    %v884 = vadd.f32 %v828, %v858
    %v885 = vadd.f32 %v829, %v863
    %v886 = vadd.f32 %v830, %v863
    %v887 = vadd.f32 %v831, %v868
    %v888 = vadd.f32 %v832, %v868
    %v889 = vadd.f32 %v833, %v873
    %v890 = vadd.f32 %v834, %v873
    %v891 = vmax.f32 %v875, 0.0
    %v892 = vmax.f32 %v876, 0.0
    %v893 = vmax.f32 %v877, 0.0
    %v894 = vmax.f32 %v878, 0.0
    %v895 = vmax.f32 %v879, 0.0
    %v896 = vmax.f32 %v880, 0.0
    %v897 = vmax.f32 %v881, 0.0
    %v898 = vmax.f32 %v882, 0.0
    %v899 = vmax.f32 %v883, 0.0
    %v900 = vmax.f32 %v884, 0.0
    %v901 = vmax.f32 %v885, 0.0
    %v902 = vmax.f32 %v886, 0.0
    %v903 = vmax.f32 %v887, 0.0
    %v904 = vmax.f32 %v888, 0.0
    %v905 = vmax.f32 %v889, 0.0
    %v906 = vmax.f32 %v890, 0.0
    %s907 = sadd.s32 %s338, 1
    %s908 = smul.u32 %s907, 16
    %s909 = smul.addr %s908, 8
    %s910 = scalar_lea.vmem %s2, %s909
    %v911 = vld [vmem:[%s910] sm:$0xff]
    %v912 = vld [vmem:[%s910 + $0x8] sm:$0xff]
    %v913 = vld [vmem:[%s910 + $0x10] sm:$0xff]
    %v914 = vld [vmem:[%s910 + $0x18] sm:$0xff]
    %v915 = vld [vmem:[%s910 + $0x20] sm:$0xff]
    %v916 = vld [vmem:[%s910 + $0x28] sm:$0xff]
    %v917 = vld [vmem:[%s910 + $0x30] sm:$0xff]
    %v918 = vld [vmem:[%s910 + $0x38] sm:$0xff]
    %v919 = vld [vmem:[%s910 + $0x40] sm:$0xff]
    %v920 = vld [vmem:[%s910 + $0x48] sm:$0xff]
    %v921 = vld [vmem:[%s910 + $0x50] sm:$0xff]
    %v922 = vld [vmem:[%s910 + $0x58] sm:$0xff]
    %v923 = vld [vmem:[%s910 + $0x60] sm:$0xff]
    %v924 = vld [vmem:[%s910 + $0x68] sm:$0xff]
    %v925 = vld [vmem:[%s910 + $0x70] sm:$0xff]
    %v926 = vld [vmem:[%s910 + $0x78] sm:$0xff]
    %927 = vrot.lane.b32.xlu0 %v891, 1
    %v928 = vpop.permute.xlu0 %927
    %929 = vrot.lane.b32.xlu0 %v893, 1
    %v930 = vpop.permute.xlu0 %929
    %931 = vrot.lane.b32.xlu0 %v895, 1
    %v932 = vpop.permute.xlu0 %931
    %933 = vrot.lane.b32.xlu0 %v897, 1
    %v934 = vpop.permute.xlu0 %933
    %935 = vrot.lane.b32.xlu0 %v899, 1
    %v936 = vpop.permute.xlu0 %935
    %937 = vrot.lane.b32.xlu0 %v901, 1
    %v938 = vpop.permute.xlu0 %937
    %939 = vrot.lane.b32.xlu0 %v903, 1
    %v940 = vpop.permute.xlu0 %939
    %941 = vrot.lane.b32.xlu0 %v905, 1
    %v942 = vpop.permute.xlu0 %941
    %943 = vrot.lane.b32.xlu0 %v892, 1
    %v944 = vpop.permute.xlu0 %943
    %945 = vrot.lane.b32.xlu0 %v894, 1
    %v946 = vpop.permute.xlu0 %945
    %947 = vrot.lane.b32.xlu0 %v896, 1
    %v948 = vpop.permute.xlu0 %947
    %949 = vrot.lane.b32.xlu0 %v898, 1
    %v950 = vpop.permute.xlu0 %949
    %951 = vrot.lane.b32.xlu0 %v900, 1
    %v952 = vpop.permute.xlu0 %951
    %953 = vrot.lane.b32.xlu0 %v902, 1
    %v954 = vpop.permute.xlu0 %953
    %955 = vrot.lane.b32.xlu0 %v904, 1
    %v956 = vpop.permute.xlu0 %955
    %957 = vrot.lane.b32.xlu0 %v906, 1
    %v958 = vpop.permute.xlu0 %957
    %v959 = vsel %vm78, %v928, %v944
    %v960 = vsel %vm78, %v930, %v946
    %v961 = vsel %vm78, %v932, %v948
    %v962 = vsel %vm78, %v934, %v950
    %v963 = vsel %vm78, %v936, %v952
    %v964 = vsel %vm78, %v938, %v954
    %v965 = vsel %vm78, %v940, %v956
    %v966 = vsel %vm78, %v942, %v958
    %v967 = vsel %vm78, %v944, %v928
    %v968 = vsel %vm78, %v946, %v930
    %v969 = vsel %vm78, %v948, %v932
    %v970 = vsel %vm78, %v950, %v934
    %v971 = vsel %vm78, %v952, %v936
    %v972 = vsel %vm78, %v954, %v938
    %v973 = vsel %vm78, %v956, %v940
    %v974 = vsel %vm78, %v958, %v942
    %v975 = vmul.f32 %v967, %v54
    %v976 = vmul.f32 %v959, %v55
    %v977 = vmul.f32 %v968, %v54
    %v978 = vmul.f32 %v960, %v55
    %v979 = vmul.f32 %v969, %v54
    %v980 = vmul.f32 %v961, %v55
    %v981 = vmul.f32 %v970, %v54
    %v982 = vmul.f32 %v962, %v55
    %v983 = vmul.f32 %v971, %v54
    %v984 = vmul.f32 %v963, %v55
    %v985 = vmul.f32 %v972, %v54
    %v986 = vmul.f32 %v964, %v55
    %v987 = vmul.f32 %v973, %v54
    %v988 = vmul.f32 %v965, %v55
    %v989 = vmul.f32 %v974, %v54
    %v990 = vmul.f32 %v966, %v55
    %991 = vrot.lane.b32.xlu0 %v891, 127
    %v992 = vpop.permute.xlu0 %991
    %993 = vrot.lane.b32.xlu0 %v893, 127
    %v994 = vpop.permute.xlu0 %993
    %995 = vrot.lane.b32.xlu0 %v895, 127
    %v996 = vpop.permute.xlu0 %995
    %997 = vrot.lane.b32.xlu0 %v897, 127
    %v998 = vpop.permute.xlu0 %997
    %999 = vrot.lane.b32.xlu0 %v899, 127
    %v1000 = vpop.permute.xlu0 %999
    %1001 = vrot.lane.b32.xlu0 %v901, 127
    %v1002 = vpop.permute.xlu0 %1001
    %1003 = vrot.lane.b32.xlu0 %v903, 127
    %v1004 = vpop.permute.xlu0 %1003
    %1005 = vrot.lane.b32.xlu0 %v905, 127
    %v1006 = vpop.permute.xlu0 %1005
    %1007 = vrot.lane.b32.xlu0 %v892, 127
    %v1008 = vpop.permute.xlu0 %1007
    %1009 = vrot.lane.b32.xlu0 %v894, 127
    %v1010 = vpop.permute.xlu0 %1009
    %1011 = vrot.lane.b32.xlu0 %v896, 127
    %v1012 = vpop.permute.xlu0 %1011
    %1013 = vrot.lane.b32.xlu0 %v898, 127
    %v1014 = vpop.permute.xlu0 %1013
    %1015 = vrot.lane.b32.xlu0 %v900, 127
    %v1016 = vpop.permute.xlu0 %1015
    %1017 = vrot.lane.b32.xlu0 %v902, 127
    %v1018 = vpop.permute.xlu0 %1017
    %1019 = vrot.lane.b32.xlu0 %v904, 127
    %v1020 = vpop.permute.xlu0 %1019
    %1021 = vrot.lane.b32.xlu0 %v906, 127
    %v1022 = vpop.permute.xlu0 %1021
    %v1023 = vsel %vm87, %v992, %v1008
    %v1024 = vsel %vm87, %v994, %v1010
    %v1025 = vsel %vm87, %v996, %v1012
    %v1026 = vsel %vm87, %v998, %v1014
    %v1027 = vsel %vm87, %v1000, %v1016
    %v1028 = vsel %vm87, %v1002, %v1018
    %v1029 = vsel %vm87, %v1004, %v1020
    %v1030 = vsel %vm87, %v1006, %v1022
    %v1031 = vsel %vm87, %v1008, %v992
    %v1032 = vsel %vm87, %v1010, %v994
    %v1033 = vsel %vm87, %v1012, %v996
    %v1034 = vsel %vm87, %v1014, %v998
    %v1035 = vsel %vm87, %v1016, %v1000
    %v1036 = vsel %vm87, %v1018, %v1002
    %v1037 = vsel %vm87, %v1020, %v1004
    %v1038 = vsel %vm87, %v1022, %v1006
    %v1039 = vmul.f32 %v1023, %v60
    %v1040 = vmul.f32 %v1031, %v61
    %v1041 = vmul.f32 %v1024, %v60
    %v1042 = vmul.f32 %v1032, %v61
    %v1043 = vmul.f32 %v1025, %v60
    %v1044 = vmul.f32 %v1033, %v61
    %v1045 = vmul.f32 %v1026, %v60
    %v1046 = vmul.f32 %v1034, %v61
    %v1047 = vmul.f32 %v1027, %v60
    %v1048 = vmul.f32 %v1035, %v61
    %v1049 = vmul.f32 %v1028, %v60
    %v1050 = vmul.f32 %v1036, %v61
    %v1051 = vmul.f32 %v1029, %v60
    %v1052 = vmul.f32 %v1037, %v61
    %v1053 = vmul.f32 %v1030, %v60
    %v1054 = vmul.f32 %v1038, %v61
    %v1056 = vsel %vm486, %v912, 0
    %v1059 = vsel %vm486, %v914, 0
    %v1062 = vsel %vm486, %v916, 0
    %v1065 = vsel %vm486, %v918, 0
    %v1068 = vsel %vm486, %v920, 0
    %v1071 = vsel %vm486, %v922, 0
    %v1074 = vsel %vm486, %v924, 0
    %v1077 = vsel %vm486, %v926, 0
    %1079 = vmatprep.subr.mxu0 %v906
    %1080 = vmatpush1.msra.mxu0 %v905
    %1081 = vmatprep.subr.mxu0 %v904
    %1082 = vmatpush1.msra.mxu0 %v903
    %1083 = vmatprep.subr.mxu0 %v902
    %1084 = vmatpush1.msra.mxu0 %v901
    %1085 = vmatprep.subr.mxu0 %v900
    %1086 = vmatpush1.msra.mxu0 %v899
    %1087 = vmatprep.subr.mxu0 %v898
    %1088 = vmatpush1.msra.mxu0 %v897
    %1089 = vmatprep.subr.mxu0 %v896
    %1090 = vmatpush1.msra.mxu0 %v895
    %1091 = vmatprep.subr.mxu0 %v894
    %1092 = vmatpush1.msra.mxu0 %v893
    %1093 = vmatprep.subr.mxu0 %v892
    %1094 = vmatpush1.msra.mxu0 %v891
    %1095 = vmatprep.subr.mxu0 %v990
    %1096 = vmatpush1.msra.mxu0 %v989
    %1097 = vmatprep.subr.mxu0 %v988
    %1098 = vmatpush1.msra.mxu0 %v987
    %1099 = vmatprep.subr.mxu0 %v986
    %1100 = vmatpush1.msra.mxu0 %v985
    %1101 = vmatprep.subr.mxu0 %v984
    %1102 = vmatpush1.msra.mxu0 %v983
    %1103 = vmatprep.subr.mxu0 %v982
    %1104 = vmatpush1.msra.mxu0 %v981
    %1105 = vmatprep.subr.mxu0 %v980
    %1106 = vmatpush1.msra.mxu0 %v979
    %1107 = vmatprep.subr.mxu0 %v978
    %1108 = vmatpush1.msra.mxu0 %v977
    %1109 = vmatprep.subr.mxu0 %v976
    %1110 = vmatpush1.msra.mxu0 %v975
    %1111 = vmatprep.subr.mxu0 0.0
    %1112 = vmatpush2.msra.mxu0 0.0
    %1113 = vmatprep.subr.mxu0 0.0
    %1114 = vmatpush2.msra.mxu0 0.0
    %1115 = vmatprep.subr.mxu0 0.0
    %1116 = vmatpush2.msra.mxu0 0.0
    %1117 = vmatprep.subr.mxu0 0.0
    %1118 = vmatpush2.msra.mxu0 0.0
    %1119 = vmatprep.subr.mxu0 0.0
    %1120 = vmatpush2.msra.mxu0 0.0
    %1121 = vmatprep.subr.mxu0 0.0
    %1122 = vmatpush2.msra.mxu0 0.0
    %1123 = vmatprep.subr.mxu0 0.0
    %1124 = vmatpush2.msra.mxu0 0.0
    %1125 = vmatprep.subr.mxu0 0.0
    %1126 = vmatpush2.msra.mxu0 0.0
    %1127 = vmatprep.subr.mxu0 %v1054
    %1128 = vmatpush2.msra.mxu0 %v1053
    %1129 = vmatprep.subr.mxu0 %v1052
    %1130 = vmatpush2.msra.mxu0 %v1051
    %1131 = vmatprep.subr.mxu0 %v1050
    %1132 = vmatpush2.msra.mxu0 %v1049
    %1133 = vmatprep.subr.mxu0 %v1048
    %1134 = vmatpush2.msra.mxu0 %v1047
    %1135 = vmatprep.subr.mxu0 %v1046
    %1136 = vmatpush2.msra.mxu0 %v1045
    %1137 = vmatprep.subr.mxu0 %v1044
    %1138 = vmatpush2.msra.mxu0 %v1043
    %1139 = vmatprep.subr.mxu0 %v1042
    %1140 = vmatpush2.msra.mxu0 %v1041
    %1141 = vmatprep.subr.mxu0 %v1040
    %1142 = vmatpush2.msra.mxu0 %v1039
    %1143 = vmatprep.mubr.f32.mxu0 %v1056
    %1144 = vmatmul.mubr.f32.gmra.mxu0 %v911
    %v1145 = vpop.f32.mrf.mxu0
    %v1146 = vadd.f32 0.0, %v1145
    %v1147 = vpop.f32.mrf.mxu0
    %v1148 = vadd.f32 0.0, %v1147
    %1149 = vmatprep.mubr.f32.mxu0 %v1059
    %1150 = vmatmul.mubr.f32.gmra.mxu0 %v913
    %v1151 = vpop.f32.mrf.mxu0
    %v1152 = vadd.f32 0.0, %v1151
    %v1153 = vpop.f32.mrf.mxu0
    %v1154 = vadd.f32 0.0, %v1153
    %1155 = vmatprep.mubr.f32.mxu0 %v1062
    %1156 = vmatmul.mubr.f32.gmra.mxu0 %v915
    %v1157 = vpop.f32.mrf.mxu0
    %v1158 = vadd.f32 0.0, %v1157
    %v1159 = vpop.f32.mrf.mxu0
    %v1160 = vadd.f32 0.0, %v1159
    %1161 = vmatprep.mubr.f32.mxu0 %v1065
    %1162 = vmatmul.mubr.f32.gmra.mxu0 %v917
    %v1163 = vpop.f32.mrf.mxu0
    %v1164 = vadd.f32 0.0, %v1163
    %v1165 = vpop.f32.mrf.mxu0
    %v1166 = vadd.f32 0.0, %v1165
    %1167 = vmatprep.mubr.f32.mxu0 %v1068
    %1168 = vmatmul.mubr.f32.gmra.mxu0 %v919
    %v1169 = vpop.f32.mrf.mxu0
    %v1170 = vadd.f32 0.0, %v1169
    %v1171 = vpop.f32.mrf.mxu0
    %v1172 = vadd.f32 0.0, %v1171
    %1173 = vmatprep.mubr.f32.mxu0 %v1071
    %1174 = vmatmul.mubr.f32.gmra.mxu0 %v921
    %v1175 = vpop.f32.mrf.mxu0
    %v1176 = vadd.f32 0.0, %v1175
    %v1177 = vpop.f32.mrf.mxu0
    %v1178 = vadd.f32 0.0, %v1177
    %1179 = vmatprep.mubr.f32.mxu0 %v1074
    %1180 = vmatmul.mubr.f32.gmra.mxu0 %v923
    %v1181 = vpop.f32.mrf.mxu0
    %v1182 = vadd.f32 0.0, %v1181
    %v1183 = vpop.f32.mrf.mxu0
    %v1184 = vadd.f32 0.0, %v1183
    %1185 = vmatprep.mubr.f32.mxu0 %v1077
    %1186 = vmatmul.mubr.f32.gmra.mxu0 %v925
    %v1187 = vpop.f32.mrf.mxu0
    %v1188 = vadd.f32 0.0, %v1187
    %v1189 = vpop.f32.mrf.mxu0
    %v1190 = vadd.f32 0.0, %v1189
    %1191 = vdwg.mxu0
    %s1192 = smul.u32 %s907, 64
    %s1193 = scalar_lea.vmem %s3, %s1192
    %v1194 = vld [vmem:[%s1193] sm:$0xff]
    %v1195 = vld [vmem:[%s1193 + $0x8] sm:$0xff]
    %v1196 = vld [vmem:[%s1193 + $0x10] sm:$0xff]
    %v1197 = vld [vmem:[%s1193 + $0x18] sm:$0xff]
    %v1198 = vld [vmem:[%s1193 + $0x20] sm:$0xff]
    %v1199 = vld [vmem:[%s1193 + $0x28] sm:$0xff]
    %v1200 = vld [vmem:[%s1193 + $0x30] sm:$0xff]
    %v1201 = vld [vmem:[%s1193 + $0x38] sm:$0xff]
    %s1202 = scalar_lea.vmem %s4, %s1192
    %v1203 = vld [vmem:[%s1202] sm:$0xff]
    %v1204 = vld [vmem:[%s1202 + $0x8] sm:$0xff]
    %v1205 = vld [vmem:[%s1202 + $0x10] sm:$0xff]
    %v1206 = vld [vmem:[%s1202 + $0x18] sm:$0xff]
    %v1207 = vld [vmem:[%s1202 + $0x20] sm:$0xff]
    %v1208 = vld [vmem:[%s1202 + $0x28] sm:$0xff]
    %v1209 = vld [vmem:[%s1202 + $0x30] sm:$0xff]
    %v1210 = vld [vmem:[%s1202 + $0x38] sm:$0xff]
    %v1211 = vadd.f32 %v1146, %v1148
    %1212 = vadd.xlane.f32.xlu0 %v1211
    %v1213 = vpop.xlane.xlu0 %1212
    %v1214 = vadd.f32 %v1152, %v1154
    %1215 = vadd.xlane.f32.xlu0 %v1214
    %v1216 = vpop.xlane.xlu0 %1215
    %v1217 = vadd.f32 %v1158, %v1160
    %1218 = vadd.xlane.f32.xlu0 %v1217
    %v1219 = vpop.xlane.xlu0 %1218
    %v1220 = vadd.f32 %v1164, %v1166
    %1221 = vadd.xlane.f32.xlu0 %v1220
    %v1222 = vpop.xlane.xlu0 %1221
    %v1223 = vadd.f32 %v1170, %v1172
    %1224 = vadd.xlane.f32.xlu0 %v1223
    %v1225 = vpop.xlane.xlu0 %1224
    %v1226 = vadd.f32 %v1176, %v1178
    %1227 = vadd.xlane.f32.xlu0 %v1226
    %v1228 = vpop.xlane.xlu0 %1227
    %v1229 = vadd.f32 %v1182, %v1184
    %1230 = vadd.xlane.f32.xlu0 %v1229
    %v1231 = vpop.xlane.xlu0 %1230
    %v1232 = vadd.f32 %v1188, %v1190
    %1233 = vadd.xlane.f32.xlu0 %v1232
    %v1234 = vpop.xlane.xlu0 %1233
    %v1235 = vmul.f32 %v1213, 0.00390625
    %v1236 = vmul.f32 %v1216, 0.00390625
    %v1237 = vmul.f32 %v1219, 0.00390625
    %v1238 = vmul.f32 %v1222, 0.00390625
    %v1239 = vmul.f32 %v1225, 0.00390625
    %v1240 = vmul.f32 %v1228, 0.00390625
    %v1241 = vmul.f32 %v1231, 0.00390625
    %v1242 = vmul.f32 %v1234, 0.00390625
    %v1243 = vmul.f32 %v1146, %v1146
    %v1244 = vmul.f32 %v1148, %v1148
    %v1245 = vmul.f32 %v1152, %v1152
    %v1246 = vmul.f32 %v1154, %v1154
    %v1247 = vmul.f32 %v1158, %v1158
    %v1248 = vmul.f32 %v1160, %v1160
    %v1249 = vmul.f32 %v1164, %v1164
    %v1250 = vmul.f32 %v1166, %v1166
    %v1251 = vmul.f32 %v1170, %v1170
    %v1252 = vmul.f32 %v1172, %v1172
    %v1253 = vmul.f32 %v1176, %v1176
    %v1254 = vmul.f32 %v1178, %v1178
    %v1255 = vmul.f32 %v1182, %v1182
    %v1256 = vmul.f32 %v1184, %v1184
    %v1257 = vmul.f32 %v1188, %v1188
    %v1258 = vmul.f32 %v1190, %v1190
    %v1259 = vadd.f32 %v1243, %v1244
    %1260 = vadd.xlane.f32.xlu0 %v1259
    %v1261 = vpop.xlane.xlu0 %1260
    %v1262 = vadd.f32 %v1245, %v1246
    %1263 = vadd.xlane.f32.xlu0 %v1262
    %v1264 = vpop.xlane.xlu0 %1263
    %v1265 = vadd.f32 %v1247, %v1248
    %1266 = vadd.xlane.f32.xlu0 %v1265
    %v1267 = vpop.xlane.xlu0 %1266
    %v1268 = vadd.f32 %v1249, %v1250
    %1269 = vadd.xlane.f32.xlu0 %v1268
    %v1270 = vpop.xlane.xlu0 %1269
    %v1271 = vadd.f32 %v1251, %v1252
    %1272 = vadd.xlane.f32.xlu0 %v1271
    %v1273 = vpop.xlane.xlu0 %1272
    %v1274 = vadd.f32 %v1253, %v1254
    %1275 = vadd.xlane.f32.xlu0 %v1274
    %v1276 = vpop.xlane.xlu0 %1275
    %v1277 = vadd.f32 %v1255, %v1256
    %1278 = vadd.xlane.f32.xlu0 %v1277
    %v1279 = vpop.xlane.xlu0 %1278
    %v1280 = vadd.f32 %v1257, %v1258
    %1281 = vadd.xlane.f32.xlu0 %v1280
    %v1282 = vpop.xlane.xlu0 %1281
    %v1283 = vmul.f32 %v1261, 0.00390625
    %v1284 = vmul.f32 %v1264, 0.00390625
    %v1285 = vmul.f32 %v1267, 0.00390625
    %v1286 = vmul.f32 %v1270, 0.00390625
    %v1287 = vmul.f32 %v1273, 0.00390625
    %v1288 = vmul.f32 %v1276, 0.00390625
    %v1289 = vmul.f32 %v1279, 0.00390625
    %v1290 = vmul.f32 %v1282, 0.00390625
    %v1291 = vmul.f32 %v1235, %v1235
    %v1292 = vmul.f32 %v1236, %v1236
    %v1293 = vmul.f32 %v1237, %v1237
    %v1294 = vmul.f32 %v1238, %v1238
    %v1295 = vmul.f32 %v1239, %v1239
    %v1296 = vmul.f32 %v1240, %v1240
    %v1297 = vmul.f32 %v1241, %v1241
    %v1298 = vmul.f32 %v1242, %v1242
    %v1299 = vsub.f32 %v1283, %v1291
    %v1300 = vsub.f32 %v1284, %v1292
    %v1301 = vsub.f32 %v1285, %v1293
    %v1302 = vsub.f32 %v1286, %v1294
    %v1303 = vsub.f32 %v1287, %v1295
    %v1304 = vsub.f32 %v1288, %v1296
    %v1305 = vsub.f32 %v1289, %v1297
    %v1306 = vsub.f32 %v1290, %v1298
    %v1307 = vadd.f32 %v1299, 1e-05
    %v1308 = vadd.f32 %v1300, 1e-05
    %v1309 = vadd.f32 %v1301, 1e-05
    %v1310 = vadd.f32 %v1302, 1e-05
    %v1311 = vadd.f32 %v1303, 1e-05
    %v1312 = vadd.f32 %v1304, 1e-05
    %v1313 = vadd.f32 %v1305, 1e-05
    %v1314 = vadd.f32 %v1306, 1e-05
    %v1315 = vrsqrt.pop %v1307
    %v1316 = vrsqrt.pop %v1308
    %v1317 = vrsqrt.pop %v1309
    %v1318 = vrsqrt.pop %v1310
    %v1319 = vrsqrt.pop %v1311
    %v1320 = vrsqrt.pop %v1312
    %v1321 = vrsqrt.pop %v1313
    %v1322 = vrsqrt.pop %v1314
    %v1323 = vmul.f32 %v1315, %v1194
    %v1324 = vmul.f32 %v1316, %v1195
    %v1325 = vmul.f32 %v1317, %v1196
    %v1326 = vmul.f32 %v1318, %v1197
    %v1327 = vmul.f32 %v1319, %v1198
    %v1328 = vmul.f32 %v1320, %v1199
    %v1329 = vmul.f32 %v1321, %v1200
    %v1330 = vmul.f32 %v1322, %v1201
    %v1331 = vsub.f32 %v1146, %v1235
    %v1332 = vsub.f32 %v1148, %v1235
    %v1333 = vsub.f32 %v1152, %v1236
    %v1334 = vsub.f32 %v1154, %v1236
    %v1335 = vsub.f32 %v1158, %v1237
    %v1336 = vsub.f32 %v1160, %v1237
    %v1337 = vsub.f32 %v1164, %v1238
    %v1338 = vsub.f32 %v1166, %v1238
    %v1339 = vsub.f32 %v1170, %v1239
    %v1340 = vsub.f32 %v1172, %v1239
    %v1341 = vsub.f32 %v1176, %v1240
    %v1342 = vsub.f32 %v1178, %v1240
    %v1343 = vsub.f32 %v1182, %v1241
    %v1344 = vsub.f32 %v1184, %v1241
    %v1345 = vsub.f32 %v1188, %v1242
    %v1346 = vsub.f32 %v1190, %v1242
    %1348 = vset.pattern.permute.xlu0 0
    %1349 = vperm.xlu0 %1348, %v1323
    %v1350 = vpop.permute.xlu0 %1349
    %1353 = vset.pattern.permute.xlu0 0
    %1354 = vperm.xlu0 %1353, %v1324
    %v1355 = vpop.permute.xlu0 %1354
    %1358 = vset.pattern.permute.xlu0 0
    %1359 = vperm.xlu0 %1358, %v1325
    %v1360 = vpop.permute.xlu0 %1359
    %1363 = vset.pattern.permute.xlu0 0
    %1364 = vperm.xlu0 %1363, %v1326
    %v1365 = vpop.permute.xlu0 %1364
    %1368 = vset.pattern.permute.xlu0 0
    %1369 = vperm.xlu0 %1368, %v1327
    %v1370 = vpop.permute.xlu0 %1369
    %1373 = vset.pattern.permute.xlu0 0
    %1374 = vperm.xlu0 %1373, %v1328
    %v1375 = vpop.permute.xlu0 %1374
    %1378 = vset.pattern.permute.xlu0 0
    %1379 = vperm.xlu0 %1378, %v1329
    %v1380 = vpop.permute.xlu0 %1379
    %1383 = vset.pattern.permute.xlu0 0
    %1384 = vperm.xlu0 %1383, %v1330
    %v1385 = vpop.permute.xlu0 %1384
    %v1387 = vmul.f32 %v1331, %v1350
    %v1388 = vmul.f32 %v1332, %v1350
    %v1389 = vmul.f32 %v1333, %v1355
    %v1390 = vmul.f32 %v1334, %v1355
    %v1391 = vmul.f32 %v1335, %v1360
    %v1392 = vmul.f32 %v1336, %v1360
    %v1393 = vmul.f32 %v1337, %v1365
    %v1394 = vmul.f32 %v1338, %v1365
    %v1395 = vmul.f32 %v1339, %v1370
    %v1396 = vmul.f32 %v1340, %v1370
    %v1397 = vmul.f32 %v1341, %v1375
    %v1398 = vmul.f32 %v1342, %v1375
    %v1399 = vmul.f32 %v1343, %v1380
    %v1400 = vmul.f32 %v1344, %v1380
    %v1401 = vmul.f32 %v1345, %v1385
    %v1402 = vmul.f32 %v1346, %v1385
    %1404 = vset.pattern.permute.xlu0 0
    %1405 = vperm.xlu0 %1404, %v1203
    %v1406 = vpop.permute.xlu0 %1405
    %1409 = vset.pattern.permute.xlu0 0
    %1410 = vperm.xlu0 %1409, %v1204
    %v1411 = vpop.permute.xlu0 %1410
    %1414 = vset.pattern.permute.xlu0 0
    %1415 = vperm.xlu0 %1414, %v1205
    %v1416 = vpop.permute.xlu0 %1415
    %1419 = vset.pattern.permute.xlu0 0
    %1420 = vperm.xlu0 %1419, %v1206
    %v1421 = vpop.permute.xlu0 %1420
    %1424 = vset.pattern.permute.xlu0 0
    %1425 = vperm.xlu0 %1424, %v1207
    %v1426 = vpop.permute.xlu0 %1425
    %1429 = vset.pattern.permute.xlu0 0
    %1430 = vperm.xlu0 %1429, %v1208
    %v1431 = vpop.permute.xlu0 %1430
    %1434 = vset.pattern.permute.xlu0 0
    %1435 = vperm.xlu0 %1434, %v1209
    %v1436 = vpop.permute.xlu0 %1435
    %1439 = vset.pattern.permute.xlu0 0
    %1440 = vperm.xlu0 %1439, %v1210
    %v1441 = vpop.permute.xlu0 %1440
    %v1443 = vadd.f32 %v1387, %v1406
    %v1444 = vadd.f32 %v1388, %v1406
    %v1445 = vadd.f32 %v1389, %v1411
    %v1446 = vadd.f32 %v1390, %v1411
    %v1447 = vadd.f32 %v1391, %v1416
    %v1448 = vadd.f32 %v1392, %v1416
    %v1449 = vadd.f32 %v1393, %v1421
    %v1450 = vadd.f32 %v1394, %v1421
    %v1451 = vadd.f32 %v1395, %v1426
    %v1452 = vadd.f32 %v1396, %v1426
    %v1453 = vadd.f32 %v1397, %v1431
    %v1454 = vadd.f32 %v1398, %v1431
    %v1455 = vadd.f32 %v1399, %v1436
    %v1456 = vadd.f32 %v1400, %v1436
    %v1457 = vadd.f32 %v1401, %v1441
    %v1458 = vadd.f32 %v1402, %v1441
    %v1459 = vadd.f32 %v322, %v1443
    %v1460 = vadd.f32 %v323, %v1444
    %v1461 = vadd.f32 %v324, %v1445
    %v1462 = vadd.f32 %v325, %v1446
    %v1463 = vadd.f32 %v326, %v1447
    %v1464 = vadd.f32 %v327, %v1448
    %v1465 = vadd.f32 %v328, %v1449
    %v1466 = vadd.f32 %v329, %v1450
    %v1467 = vadd.f32 %v330, %v1451
    %v1468 = vadd.f32 %v331, %v1452
    %v1469 = vadd.f32 %v332, %v1453
    %v1470 = vadd.f32 %v333, %v1454
    %v1471 = vadd.f32 %v334, %v1455
    %v1472 = vadd.f32 %v335, %v1456
    %v1473 = vadd.f32 %v336, %v1457
    %v1474 = vadd.f32 %v337, %v1458
    %v1475 = vmax.f32 %v1459, 0.0
    %v1476 = vmax.f32 %v1460, 0.0
    %v1477 = vmax.f32 %v1461, 0.0
    %v1478 = vmax.f32 %v1462, 0.0
    %v1479 = vmax.f32 %v1463, 0.0
    %v1480 = vmax.f32 %v1464, 0.0
    %v1481 = vmax.f32 %v1465, 0.0
    %v1482 = vmax.f32 %v1466, 0.0
    %v1483 = vmax.f32 %v1467, 0.0
    %v1484 = vmax.f32 %v1468, 0.0
    %v1485 = vmax.f32 %v1469, 0.0
    %v1486 = vmax.f32 %v1470, 0.0
    %v1487 = vmax.f32 %v1471, 0.0
    %v1488 = vmax.f32 %v1472, 0.0
    %v1489 = vmax.f32 %v1473, 0.0
    %v1490 = vmax.f32 %v1474, 0.0
  $region30: #{dncnn_forward.1} parent=0 // loop_footer
    %s321 = sadd.s32 1, %s317
  $region31: #{dncnn_forward.1} parent=0 // loop_footer_branch
    %316 = sbr.rel target = $region27
  $region32: #{dncnn_forward.1} parent=0 // loop_exit
    _
  %v1491 = vld [vmem:[%s5] sm:$0xff]
  %v1492 = vld [vmem:[%s5 + $0x8] sm:$0xff]
  %1493 = vrot.lane.b32.xlu0 %v322, 1
  %v1494 = vpop.permute.xlu0 %1493
  %1495 = vrot.lane.b32.xlu0 %v324, 1
  %v1496 = vpop.permute.xlu0 %1495
  %1497 = vrot.lane.b32.xlu0 %v326, 1
  %v1498 = vpop.permute.xlu0 %1497
  %1499 = vrot.lane.b32.xlu0 %v328, 1
  %v1500 = vpop.permute.xlu0 %1499
  %1501 = vrot.lane.b32.xlu0 %v330, 1
  %v1502 = vpop.permute.xlu0 %1501
  %1503 = vrot.lane.b32.xlu0 %v332, 1
  %v1504 = vpop.permute.xlu0 %1503
  %1505 = vrot.lane.b32.xlu0 %v334, 1
  %v1506 = vpop.permute.xlu0 %1505
  %1507 = vrot.lane.b32.xlu0 %v336, 1
  %v1508 = vpop.permute.xlu0 %1507
  %1509 = vrot.lane.b32.xlu0 %v323, 1
  %v1510 = vpop.permute.xlu0 %1509
  %1511 = vrot.lane.b32.xlu0 %v325, 1
  %v1512 = vpop.permute.xlu0 %1511
  %1513 = vrot.lane.b32.xlu0 %v327, 1
  %v1514 = vpop.permute.xlu0 %1513
  %1515 = vrot.lane.b32.xlu0 %v329, 1
  %v1516 = vpop.permute.xlu0 %1515
  %1517 = vrot.lane.b32.xlu0 %v331, 1
  %v1518 = vpop.permute.xlu0 %1517
  %1519 = vrot.lane.b32.xlu0 %v333, 1
  %v1520 = vpop.permute.xlu0 %1519
  %1521 = vrot.lane.b32.xlu0 %v335, 1
  %v1522 = vpop.permute.xlu0 %1521
  %1523 = vrot.lane.b32.xlu0 %v337, 1
  %v1524 = vpop.permute.xlu0 %1523
  %v1525 = vsel %vm78, %v1494, %v1510
  %v1526 = vsel %vm78, %v1496, %v1512
  %v1527 = vsel %vm78, %v1498, %v1514
  %v1528 = vsel %vm78, %v1500, %v1516
  %v1529 = vsel %vm78, %v1502, %v1518
  %v1530 = vsel %vm78, %v1504, %v1520
  %v1531 = vsel %vm78, %v1506, %v1522
  %v1532 = vsel %vm78, %v1508, %v1524
  %v1533 = vsel %vm78, %v1510, %v1494
  %v1534 = vsel %vm78, %v1512, %v1496
  %v1535 = vsel %vm78, %v1514, %v1498
  %v1536 = vsel %vm78, %v1516, %v1500
  %v1537 = vsel %vm78, %v1518, %v1502
  %v1538 = vsel %vm78, %v1520, %v1504
  %v1539 = vsel %vm78, %v1522, %v1506
  %v1540 = vsel %vm78, %v1524, %v1508
  %v1541 = vmul.f32 %v1533, %v54
  %v1542 = vmul.f32 %v1525, %v55
  %v1543 = vmul.f32 %v1534, %v54
  %v1544 = vmul.f32 %v1526, %v55
  %v1545 = vmul.f32 %v1535, %v54
  %v1546 = vmul.f32 %v1527, %v55
  %v1547 = vmul.f32 %v1536, %v54
  %v1548 = vmul.f32 %v1528, %v55
  %v1549 = vmul.f32 %v1537, %v54
  %v1550 = vmul.f32 %v1529, %v55
  %v1551 = vmul.f32 %v1538, %v54
  %v1552 = vmul.f32 %v1530, %v55
  %v1553 = vmul.f32 %v1539, %v54
  %v1554 = vmul.f32 %v1531, %v55
  %v1555 = vmul.f32 %v1540, %v54
  %v1556 = vmul.f32 %v1532, %v55
  %1557 = vrot.lane.b32.xlu0 %v322, 127
  %v1558 = vpop.permute.xlu0 %1557
  %1559 = vrot.lane.b32.xlu0 %v324, 127
  %v1560 = vpop.permute.xlu0 %1559
  %1561 = vrot.lane.b32.xlu0 %v326, 127
  %v1562 = vpop.permute.xlu0 %1561
  %1563 = vrot.lane.b32.xlu0 %v328, 127
  %v1564 = vpop.permute.xlu0 %1563
  %1565 = vrot.lane.b32.xlu0 %v330, 127
  %v1566 = vpop.permute.xlu0 %1565
  %1567 = vrot.lane.b32.xlu0 %v332, 127
  %v1568 = vpop.permute.xlu0 %1567
  %1569 = vrot.lane.b32.xlu0 %v334, 127
  %v1570 = vpop.permute.xlu0 %1569
  %1571 = vrot.lane.b32.xlu0 %v336, 127
  %v1572 = vpop.permute.xlu0 %1571
  %1573 = vrot.lane.b32.xlu0 %v323, 127
  %v1574 = vpop.permute.xlu0 %1573
  %1575 = vrot.lane.b32.xlu0 %v325, 127
  %v1576 = vpop.permute.xlu0 %1575
  %1577 = vrot.lane.b32.xlu0 %v327, 127
  %v1578 = vpop.permute.xlu0 %1577
  %1579 = vrot.lane.b32.xlu0 %v329, 127
  %v1580 = vpop.permute.xlu0 %1579
  %1581 = vrot.lane.b32.xlu0 %v331, 127
  %v1582 = vpop.permute.xlu0 %1581
  %1583 = vrot.lane.b32.xlu0 %v333, 127
  %v1584 = vpop.permute.xlu0 %1583
  %1585 = vrot.lane.b32.xlu0 %v335, 127
  %v1586 = vpop.permute.xlu0 %1585
  %1587 = vrot.lane.b32.xlu0 %v337, 127
  %v1588 = vpop.permute.xlu0 %1587
  %v1589 = vsel %vm87, %v1558, %v1574
  %v1590 = vsel %vm87, %v1560, %v1576
  %v1591 = vsel %vm87, %v1562, %v1578
  %v1592 = vsel %vm87, %v1564, %v1580
  %v1593 = vsel %vm87, %v1566, %v1582
  %v1594 = vsel %vm87, %v1568, %v1584
  %v1595 = vsel %vm87, %v1570, %v1586
  %v1596 = vsel %vm87, %v1572, %v1588
  %v1597 = vsel %vm87, %v1574, %v1558
  %v1598 = vsel %vm87, %v1576, %v1560
  %v1599 = vsel %vm87, %v1578, %v1562
  %v1600 = vsel %vm87, %v1580, %v1564
  %v1601 = vsel %vm87, %v1582, %v1566
  %v1602 = vsel %vm87, %v1584, %v1568
  %v1603 = vsel %vm87, %v1586, %v1570
  %v1604 = vsel %vm87, %v1588, %v1572
  %v1605 = vmul.f32 %v1589, %v60
  %v1606 = vmul.f32 %v1597, %v61
  %v1607 = vmul.f32 %v1590, %v60
  %v1608 = vmul.f32 %v1598, %v61
  %v1609 = vmul.f32 %v1591, %v60
  %v1610 = vmul.f32 %v1599, %v61
  %v1611 = vmul.f32 %v1592, %v60
  %v1612 = vmul.f32 %v1600, %v61
  %v1613 = vmul.f32 %v1593, %v60
  %v1614 = vmul.f32 %v1601, %v61
  %v1615 = vmul.f32 %v1594, %v60
  %v1616 = vmul.f32 %v1602, %v61
  %v1617 = vmul.f32 %v1595, %v60
  %v1618 = vmul.f32 %v1603, %v61
  %v1619 = vmul.f32 %v1596, %v60
  %v1620 = vmul.f32 %v1604, %v61
  %vm1621 = vcmask 523264
  %v1623 = vsel %vm1621, %v1492, 0
  %1625 = vmatprep.subr.mxu0 %v337
  %1626 = vmatpush1.msra.mxu0 %v336
  %1627 = vmatprep.subr.mxu0 %v335
  %1628 = vmatpush1.msra.mxu0 %v334
  %1629 = vmatprep.subr.mxu0 %v333
  %1630 = vmatpush1.msra.mxu0 %v332
  %1631 = vmatprep.subr.mxu0 %v331
  %1632 = vmatpush1.msra.mxu0 %v330
  %1633 = vmatprep.subr.mxu0 %v329
  %1634 = vmatpush1.msra.mxu0 %v328
  %1635 = vmatprep.subr.mxu0 %v327
  %1636 = vmatpush1.msra.mxu0 %v326
  %1637 = vmatprep.subr.mxu0 %v325
  %1638 = vmatpush1.msra.mxu0 %v324
  %1639 = vmatprep.subr.mxu0 %v323
  %1640 = vmatpush1.msra.mxu0 %v322
  %1641 = vmatprep.subr.mxu0 %v1556
  %1642 = vmatpush1.msra.mxu0 %v1555
  %1643 = vmatprep.subr.mxu0 %v1554
  %1644 = vmatpush1.msra.mxu0 %v1553
  %1645 = vmatprep.subr.mxu0 %v1552
  %1646 = vmatpush1.msra.mxu0 %v1551
  %1647 = vmatprep.subr.mxu0 %v1550
  %1648 = vmatpush1.msra.mxu0 %v1549
  %1649 = vmatprep.subr.mxu0 %v1548
  %1650 = vmatpush1.msra.mxu0 %v1547
  %1651 = vmatprep.subr.mxu0 %v1546
  %1652 = vmatpush1.msra.mxu0 %v1545
  %1653 = vmatprep.subr.mxu0 %v1544
  %1654 = vmatpush1.msra.mxu0 %v1543
  %1655 = vmatprep.subr.mxu0 %v1542
  %1656 = vmatpush1.msra.mxu0 %v1541
  %1657 = vmatprep.subr.mxu0 0.0
  %1658 = vmatpush2.msra.mxu0 0.0
  %1659 = vmatprep.subr.mxu0 0.0
  %1660 = vmatpush2.msra.mxu0 0.0
  %1661 = vmatprep.subr.mxu0 0.0
  %1662 = vmatpush2.msra.mxu0 0.0
  %1663 = vmatprep.subr.mxu0 0.0
  %1664 = vmatpush2.msra.mxu0 0.0
  %1665 = vmatprep.subr.mxu0 0.0
  %1666 = vmatpush2.msra.mxu0 0.0
  %1667 = vmatprep.subr.mxu0 0.0
  %1668 = vmatpush2.msra.mxu0 0.0
  %1669 = vmatprep.subr.mxu0 0.0
  %1670 = vmatpush2.msra.mxu0 0.0
  %1671 = vmatprep.subr.mxu0 0.0
  %1672 = vmatpush2.msra.mxu0 0.0
  %1673 = vmatprep.subr.mxu0 %v1620
  %1674 = vmatpush2.msra.mxu0 %v1619
  %1675 = vmatprep.subr.mxu0 %v1618
  %1676 = vmatpush2.msra.mxu0 %v1617
  %1677 = vmatprep.subr.mxu0 %v1616
  %1678 = vmatpush2.msra.mxu0 %v1615
  %1679 = vmatprep.subr.mxu0 %v1614
  %1680 = vmatpush2.msra.mxu0 %v1613
  %1681 = vmatprep.subr.mxu0 %v1612
  %1682 = vmatpush2.msra.mxu0 %v1611
  %1683 = vmatprep.subr.mxu0 %v1610
  %1684 = vmatpush2.msra.mxu0 %v1609
  %1685 = vmatprep.subr.mxu0 %v1608
  %1686 = vmatpush2.msra.mxu0 %v1607
  %1687 = vmatprep.subr.mxu0 %v1606
  %1688 = vmatpush2.msra.mxu0 %v1605
  %1689 = vmatprep.mubr.f32.mxu0 %v1623
  %1690 = vmatmul.mubr.f32.gmra.mxu0 %v1491
  %v1691 = vpop.f32.mrf.mxu0
  %v1692 = vadd.f32 0.0, %v1691
  %v1693 = vpop.f32.mrf.mxu0
  %v1694 = vadd.f32 0.0, %v1693
  %1695 = vdwg.mxu0
  %1696 = vst [vmem:[%s6] sm:$0xff] %v1692
  %1697 = vst [vmem:[%s6 + $0x8] sm:$0xff] %v1694
  // Predicated region
  $region33: #{dncnn_forward.1} parent=0 // pred_check
    _
  $region34: #{dncnn_forward.1} parent=0 // pred_check_branch
    %1699 = sbr.rel (0) target = $region36
  $region35: #{dncnn_forward.1} parent=0 // pred_region
    _
  $region36: #{dncnn_forward.1} parent=0 // pred_fallthru
    _
  // Predicated region
  $region37: #{dncnn_forward.1} parent=0 // pred_check
    _
  $region38: #{dncnn_forward.1} parent=0 // pred_check_branch
    %1701 = sbr.rel (0) target = $region40
  $region39: #{dncnn_forward.1} parent=0 // pred_region
    _
  $region40: #{dncnn_forward.1} parent=0 // pred_fallthru
    _

</llo_original>
